<compile_context>
chip_gen: v6e
topology: v6e:2x2x1
jax: 0.10.0
libtpu: 0.0.40
codegen_flags: <defaults>
</compile_context>

<pallas_src>
import functools

import jax
import jax.numpy as jnp
from jax.experimental import pallas as pl
from jax.experimental.pallas import tpu as pltpu


def seq_double_kernel(x_ref, w_ih1_ref, b1_ref, w_hh1_ref, w_ih2_ref, w_hh2_ref,
                      b2_ref, w_lin_ref, b_lin_ref, out_ref, *,
                      hidden, seq_len, batch):
    H = hidden
    H2 = 2 * hidden
    f32 = jnp.float32
    bf16 = jnp.bfloat16

    # Loop-invariant matmul operands, loaded once (bf16 => half the pinned vregs).
    w_ih1 = w_ih1_ref[...]                                    # (F,  8H) bf16
    w_hh1 = w_hh1_ref[...]                                    # (2H, 8H) bf16
    w_ih2 = w_ih2_ref[...]                                    # (2H, 4H) bf16
    w_hh2 = w_hh2_ref[...]                                    # (H,  4H) bf16

    # Hoisted bias broadcasts (kept fp32; added to the fp32 accumulators).
    b1 = jnp.broadcast_to(b1_ref[...], (batch, 4 * H2))       # (B, 8H)
    b2 = jnp.broadcast_to(b2_ref[...], (batch, 4 * H))        # (B, 4H)

    # g-gate lane masks (PyTorch gate order i, f, g, o).  tanh comes from the same
    # full-width sigmoid pass via tanh(x) = 2*sigmoid(2x) - 1.
    col1 = jax.lax.broadcasted_iota(jnp.int32, (batch, 4 * H2), 1)
    gmask1 = (col1 >= 2 * H2) & (col1 < 3 * H2)
    col2 = jax.lax.broadcasted_iota(jnp.int32, (batch, 4 * H), 1)
    gmask2 = (col2 >= 2 * H) & (col2 < 3 * H)

    def cell_update(z, gmask, Hg, c_prev):
        # One fused EUP pass over the whole (B, 4*Hg) gate block.
        s = jax.nn.sigmoid(jnp.where(gmask, z + z, z))
        a = jnp.where(gmask, s + s - 1.0, s)
        i = a[:, 0 * Hg:1 * Hg]
        f = a[:, 1 * Hg:2 * Hg]
        g = a[:, 2 * Hg:3 * Hg]
        o = a[:, 3 * Hg:4 * Hg]
        c_new = f * c_prev + i * g
        h_new = o * jnp.tanh(c_new)
        return h_new, c_new

    h1 = jnp.zeros((batch, H2), f32)
    c1 = jnp.zeros((batch, H2), f32)
    h2 = jnp.zeros((batch, H), f32)
    c2 = jnp.zeros((batch, H), f32)
    h1_bf = h1.astype(bf16)
    h2_bf = h2.astype(bf16)

    # Fully unrolled recurrence (seq_len is small and static); state lives in vregs.
    for t in range(seq_len):
        # Layer-1 input projection: depends only on x, so it is off the recurrent
        # critical path (the scheduler overlaps it with surrounding gate math).
        zx1 = jnp.dot(x_ref[t], w_ih1, preferred_element_type=f32) + b1

        # Layer-2 recurrent half: depends only on step t-1 state; issued before
        # layer-1's cell update so its MXU push/drain hides under EUP/VPU work.
        zh2 = jnp.dot(h2_bf, w_hh2, preferred_element_type=f32)

        # Layer 1: only the recurrent matmul sits on the sequential critical path.
        z1 = zx1 + jnp.dot(h1_bf, w_hh1, preferred_element_type=f32)
        h1, c1 = cell_update(z1, gmask1, H2, c1)
        h1_bf = h1.astype(bf16)

        # Layer 2: un-fused (no per-step lane concat of 64+32 wide operands).
        z2 = jnp.dot(h1_bf, w_ih2, preferred_element_type=f32) + zh2 + b2
        h2, c2 = cell_update(z2, gmask2, H, c2)
        h2_bf = h2.astype(bf16)

    # Linear head (H -> 1) as a lane reduce (avoids an N=1 MXU push/pop at the tail).
    out_ref[...] = (jnp.sum(h2 * w_lin_ref[...], axis=-1, keepdims=True)
                    + b_lin_ref[...])


def sequence_double_forward(x, params, hidden):
    """x: (B, T, F) float32.  Returns (B, 1) float32 (== PyTorch out[:, -1])."""
    (w_ih1_t, w_hh1_t, b1, w_ih2_t, w_hh2_t, b2, w_lin_t, b_lin) = params
    B, T, F = x.shape
    H = hidden

    # Tiny time-major relayout of x (256 bytes); the input projection itself runs in
    # the kernel preamble, so there is no separate matmul dispatch / xw1 HBM slab.
    x_tm = jnp.transpose(x, (1, 0, 2)).astype(jnp.bfloat16)          # (T, B, F)

    # bf16 MXU operands (one deterministic pass); biases / head stay fp32.
    w_ih1_bf = w_ih1_t.astype(jnp.bfloat16)                          # (F, 8H)
    w_hh1_bf = w_hh1_t.astype(jnp.bfloat16)                          # (2H, 8H)
    w_ih2_bf = w_ih2_t.astype(jnp.bfloat16)                          # (2H, 4H)
    w_hh2_bf = w_hh2_t.astype(jnp.bfloat16)                          # (H, 4H)
    w_lin_row = jnp.transpose(w_lin_t)                               # (1, H)

    kernel = functools.partial(seq_double_kernel, hidden=H, seq_len=T, batch=B)

    out = pl.pallas_call(
        kernel,
        out_shape=jax.ShapeDtypeStruct((B, 1), jnp.float32),
        grid_spec=pltpu.PrefetchScalarGridSpec(
            num_scalar_prefetch=0,
            grid=(1,),   # single invocation; the time recurrence lives inside the kernel
            in_specs=[
                pl.BlockSpec((T, B, F), lambda i: (0, 0, 0)),        # x (time-major)
                pl.BlockSpec((F, 8 * H), lambda i: (0, 0)),          # W_ih1^T
                pl.BlockSpec((1, 8 * H), lambda i: (0, 0)),          # b_ih1 + b_hh1
                pl.BlockSpec((2 * H, 8 * H), lambda i: (0, 0)),      # W_hh1^T
                pl.BlockSpec((2 * H, 4 * H), lambda i: (0, 0)),      # W_ih2^T
                pl.BlockSpec((H, 4 * H), lambda i: (0, 0)),          # W_hh2^T
                pl.BlockSpec((1, 4 * H), lambda i: (0, 0)),          # b_ih2 + b_hh2
                pl.BlockSpec((1, H), lambda i: (0, 0)),              # linear weight row
                pl.BlockSpec((1, 1), lambda i: (0, 0)),              # linear bias
            ],
            out_specs=pl.BlockSpec((B, 1), lambda i: (0, 0)),
        ),
        compiler_params=pltpu.CompilerParams(
            dimension_semantics=("arbitrary",)),
    )(x_tm, w_ih1_bf, b1, w_hh1_bf, w_ih2_bf, w_hh2_bf, b2, w_lin_row, b_lin)
    return out


def init_params(key, nb_features, hidden):
    """Deterministic init matching PyTorch shapes (uniform(-1/sqrt(H), 1/sqrt(H)))."""
    ks = jax.random.split(key, 10)
    H2, H = 2 * hidden, hidden
    k1 = 1.0 / jnp.sqrt(H2)
    k2 = 1.0 / jnp.sqrt(H)

    def u(k, shape, lim):
        return jax.random.uniform(k, shape, jnp.float32, -lim, lim)

    # LSTM1: weight_ih (4*2H, F), weight_hh (4*2H, 2H), biases (4*2H,)
    w_ih1 = u(ks[0], (4 * H2, nb_features), k1)
    w_hh1 = u(ks[1], (4 * H2, H2), k1)
    b_ih1 = u(ks[2], (4 * H2,), k1)
    b_hh1 = u(ks[3], (4 * H2,), k1)
    # LSTM2: weight_ih (4*H, 2H), weight_hh (4*H, H), biases (4*H,)
    w_ih2 = u(ks[4], (4 * H, H2), k2)
    w_hh2 = u(ks[5], (4 * H, H), k2)
    b_ih2 = u(ks[6], (4 * H,), k2)
    b_hh2 = u(ks[7], (4 * H,), k2)
    # Linear: weight (1, H), bias (1,)
    w_lin = u(ks[8], (1, H), k2)
    b_lin = u(ks[9], (1,), k2)

    params = (
        w_ih1.T,                                 # (F, 8H)
        w_hh1.T,                                 # (2H, 8H)
        (b_ih1 + b_hh1).reshape(1, 4 * H2),      # (1, 8H)
        w_ih2.T,                                 # (2H, 4H)
        w_hh2.T,                                 # (H, 4H)
        (b_ih2 + b_hh2).reshape(1, 4 * H),       # (1, 4H)
        w_lin.T,                                 # (H, 1)
        b_lin.reshape(1, 1),                     # (1, 1)
    )
    return params


def reference_forward(x, params, hidden):
    """Pure-JAX fp32 reference (lax.scan over time, HIGHEST-precision matmuls)."""
    (w_ih1_t, w_hh1_t, b1, w_ih2_t, w_hh2_t, b2, w_lin_t, b_lin) = params
    B, T, F = x.shape
    hp = jax.lax.Precision.HIGHEST

    def cell(x_t, h, c, w_ih_t, w_hh_t, b, Hg):
        gates = (jnp.dot(x_t, w_ih_t, precision=hp)
                 + jnp.dot(h, w_hh_t, precision=hp) + b)
        i = jax.nn.sigmoid(gates[:, 0 * Hg:1 * Hg])
        f = jax.nn.sigmoid(gates[:, 1 * Hg:2 * Hg])
        g = jnp.tanh(gates[:, 2 * Hg:3 * Hg])
        o = jax.nn.sigmoid(gates[:, 3 * Hg:4 * Hg])
        c = f * c + i * g
        h = o * jnp.tanh(c)
        return h, c

    def step(carry, x_t):
        h1, c1, h2, c2 = carry
        h1, c1 = cell(x_t, h1, c1, w_ih1_t, w_hh1_t, b1, 2 * hidden)
        h2, c2 = cell(h1, h2, c2, w_ih2_t, w_hh2_t, b2, hidden)
        return (h1, c1, h2, c2), h2

    init = (jnp.zeros((B, 2 * hidden)), jnp.zeros((B, 2 * hidden)),
            jnp.zeros((B, hidden)), jnp.zeros((B, hidden)))
    (_, _, h2_last, _), _ = jax.lax.scan(step, init, jnp.transpose(x, (1, 0, 2)))
    return jnp.dot(h2_last, w_lin_t, precision=hp) + b_lin


if __name__ == "__main__":
    B, T, F, HIDDEN = 2, 8, 4, 32

    key = jax.random.PRNGKey(0)
    k_x, k_p = jax.random.split(key)
    x = jax.random.normal(k_x, (B, T, F), jnp.float32)
    params = init_params(k_p, F, HIDDEN)

    out = sequence_double_forward(x, params, HIDDEN)
    out = jax.block_until_ready(out)

    ref = reference_forward(x, params, HIDDEN)
    assert out.shape == (B, 1)
    # Kernel uses bf16 MXU operands (per perf review); compare against a
    # full-precision fp32 reference with a bf16-appropriate tolerance.
    assert jnp.allclose(out, ref, atol=2e-2, rtol=2e-2), (out, ref)

    print("KERNEL_OK")
</pallas_src>

<mosaic_0001>
module attributes {stable_mosaic.version = 11 : i64} {
  func.func @seq_double_kernel(%arg0: i32, %arg1: memref<8x2x4xbf16, #tpu.memory_space<vmem>>, %arg2: memref<4x256xbf16, #tpu.memory_space<vmem>>, %arg3: memref<1x256xf32, #tpu.memory_space<vmem>>, %arg4: memref<64x256xbf16, #tpu.memory_space<vmem>>, %arg5: memref<64x128xbf16, #tpu.memory_space<vmem>>, %arg6: memref<32x128xbf16, #tpu.memory_space<vmem>>, %arg7: memref<1x128xf32, #tpu.memory_space<vmem>>, %arg8: memref<1x32xf32, #tpu.memory_space<vmem>>, %arg9: memref<1x1xf32, #tpu.memory_space<vmem>>, %arg10: memref<2x1xf32, #tpu.memory_space<vmem>>) attributes {dimension_semantics = [#tpu.dimension_semantics<arbitrary>], iteration_bounds = array<i64: 1>, scalar_prefetch = 0 : i64, scratch_operands = 0 : i64, tpu.core_type = #tpu.core_type<tc>, window_params = [{pipeline_mode = #tpu.pipeline_mode<synchronous>, transform_indices = @transform_0, window_bounds = array<i64: 8, 2, 4>}, {pipeline_mode = #tpu.pipeline_mode<synchronous>, transform_indices = @transform_1, window_bounds = array<i64: 4, 256>}, {pipeline_mode = #tpu.pipeline_mode<synchronous>, transform_indices = @transform_2, window_bounds = array<i64: 1, 256>}, {pipeline_mode = #tpu.pipeline_mode<synchronous>, transform_indices = @transform_3, window_bounds = array<i64: 64, 256>}, {pipeline_mode = #tpu.pipeline_mode<synchronous>, transform_indices = @transform_4, window_bounds = array<i64: 64, 128>}, {pipeline_mode = #tpu.pipeline_mode<synchronous>, transform_indices = @transform_5, window_bounds = array<i64: 32, 128>}, {pipeline_mode = #tpu.pipeline_mode<synchronous>, transform_indices = @transform_6, window_bounds = array<i64: 1, 128>}, {pipeline_mode = #tpu.pipeline_mode<synchronous>, transform_indices = @transform_7, window_bounds = array<i64: 1, 32>}, {pipeline_mode = #tpu.pipeline_mode<synchronous>, transform_indices = @transform_8, window_bounds = array<i64: 1, 1>}, {pipeline_mode = #tpu.pipeline_mode<synchronous>, transform_indices = @transform_9, window_bounds = array<i64: 2, 1>}]} {
    %c0 = arith.constant 0 : index
    %c0_0 = arith.constant 0 : index
    %0 = vector.load %arg2[%c0, %c0_0] : memref<4x256xbf16, #tpu.memory_space<vmem>>, vector<4x256xbf16>
    %c0_1 = arith.constant 0 : index
    %c0_2 = arith.constant 0 : index
    %1 = vector.load %arg4[%c0_1, %c0_2] : memref<64x256xbf16, #tpu.memory_space<vmem>>, vector<64x256xbf16>
    %c0_3 = arith.constant 0 : index
    %c0_4 = arith.constant 0 : index
    %2 = vector.load %arg5[%c0_3, %c0_4] : memref<64x128xbf16, #tpu.memory_space<vmem>>, vector<64x128xbf16>
    %c0_5 = arith.constant 0 : index
    %c0_6 = arith.constant 0 : index
    %3 = vector.load %arg6[%c0_5, %c0_6] : memref<32x128xbf16, #tpu.memory_space<vmem>>, vector<32x128xbf16>
    %c0_7 = arith.constant 0 : index
    %c0_8 = arith.constant 0 : index
    %4 = vector.load %arg3[%c0_7, %c0_8] : memref<1x256xf32, #tpu.memory_space<vmem>>, vector<1x256xf32>
    %5 = vector.shape_cast %4 : vector<1x256xf32> to vector<1x256xf32>
    %6 = vector.broadcast %5 : vector<1x256xf32> to vector<2x256xf32>
    %c0_9 = arith.constant 0 : index
    %c0_10 = arith.constant 0 : index
    %7 = vector.load %arg7[%c0_9, %c0_10] : memref<1x128xf32, #tpu.memory_space<vmem>>, vector<1x128xf32>
    %8 = vector.shape_cast %7 : vector<1x128xf32> to vector<1x128xf32>
    %9 = vector.broadcast %8 : vector<1x128xf32> to vector<2x128xf32>
    %10 = tpu.iota {dimensions = array<i32: 1>} : vector<2x256xi32>
    %c128_i32 = arith.constant 128 : i32
    %11 = vector.broadcast %c128_i32 : i32 to vector<2x256xi32>
    %12 = arith.cmpi sge, %10, %11 : vector<2x256xi32>
    %c192_i32 = arith.constant 192 : i32
    %13 = vector.broadcast %c192_i32 : i32 to vector<2x256xi32>
    %14 = arith.cmpi slt, %10, %13 : vector<2x256xi32>
    %15 = arith.andi %12, %14 : vector<2x256xi1>
    %16 = tpu.iota {dimensions = array<i32: 1>} : vector<2x128xi32>
    %c64_i32 = arith.constant 64 : i32
    %17 = vector.broadcast %c64_i32 : i32 to vector<2x128xi32>
    %18 = arith.cmpi sge, %16, %17 : vector<2x128xi32>
    %c96_i32 = arith.constant 96 : i32
    %19 = vector.broadcast %c96_i32 : i32 to vector<2x128xi32>
    %20 = arith.cmpi slt, %16, %19 : vector<2x128xi32>
    %21 = arith.andi %18, %20 : vector<2x128xi1>
    %cst = arith.constant 0.000000e+00 : f32
    %22 = vector.broadcast %cst : f32 to vector<2x64xf32>
    %cst_11 = arith.constant 0.000000e+00 : f32
    %23 = vector.broadcast %cst_11 : f32 to vector<2x64xf32>
    %cst_12 = arith.constant 0.000000e+00 : f32
    %24 = vector.broadcast %cst_12 : f32 to vector<2x32xf32>
    %cst_13 = arith.constant 0.000000e+00 : f32
    %25 = vector.broadcast %cst_13 : f32 to vector<2x32xf32>
    %26 = arith.truncf %22 : vector<2x64xf32> to vector<2x64xbf16>
    %27 = arith.truncf %24 : vector<2x32xf32> to vector<2x32xbf16>
    %c0_14 = arith.constant 0 : index
    %c0_15 = arith.constant 0 : index
    %c0_16 = arith.constant 0 : index
    %28 = vector.load %arg1[%c0_14, %c0_15, %c0_16] : memref<8x2x4xbf16, #tpu.memory_space<vmem>>, vector<1x2x4xbf16>
    %29 = vector.shape_cast %28 : vector<1x2x4xbf16> to vector<2x4xbf16>
    %cst_17 = arith.constant dense<0.000000e+00> : vector<2x256xf32>
    %30 = tpu.matmul %29, %0, %cst_17 {dimension_numbers = #tpu.dot_dimension_numbers<[1], [0], [0], [1], [0, 0, 1, 1], [], []>} : vector<2x4xbf16>, vector<4x256xbf16>, vector<2x256xf32> -> vector<2x256xf32>
    %31 = arith.addf %30, %6 : vector<2x256xf32>
    %cst_18 = arith.constant dense<0.000000e+00> : vector<2x128xf32>
    %32 = tpu.matmul %27, %3, %cst_18 {dimension_numbers = #tpu.dot_dimension_numbers<[1], [0], [0], [1], [0, 0, 1, 1], [], []>} : vector<2x32xbf16>, vector<32x128xbf16>, vector<2x128xf32> -> vector<2x128xf32>
    %cst_19 = arith.constant dense<0.000000e+00> : vector<2x256xf32>
    %33 = tpu.matmul %26, %1, %cst_19 {dimension_numbers = #tpu.dot_dimension_numbers<[1], [0], [0], [1], [0, 0, 1, 1], [], []>} : vector<2x64xbf16>, vector<64x256xbf16>, vector<2x256xf32> -> vector<2x256xf32>
    %34 = arith.addf %31, %33 : vector<2x256xf32>
    %35 = arith.addf %34, %34 : vector<2x256xf32>
    %36 = arith.select %15, %35, %34 : vector<2x256xi1>, vector<2x256xf32>
    %37 = arith.negf %36 : vector<2x256xf32>
    %38 = math.exp %37 : vector<2x256xf32>
    %cst_20 = arith.constant 1.000000e+00 : f32
    %39 = vector.broadcast %cst_20 : f32 to vector<2x256xf32>
    %40 = arith.addf %39, %38 : vector<2x256xf32>
    %41 = arith.divf %39, %40 : vector<2x256xf32>
    %42 = arith.addf %41, %41 : vector<2x256xf32>
    %cst_21 = arith.constant 1.000000e+00 : f32
    %43 = vector.broadcast %cst_21 : f32 to vector<2x256xf32>
    %44 = arith.subf %42, %43 : vector<2x256xf32>
    %45 = arith.select %15, %44, %41 : vector<2x256xi1>, vector<2x256xf32>
    %46 = vector.extract_strided_slice %45 {offsets = [0, 0], sizes = [2, 64], strides = [1, 1]} : vector<2x256xf32> to vector<2x64xf32>
    %47 = vector.extract_strided_slice %45 {offsets = [0, 64], sizes = [2, 64], strides = [1, 1]} : vector<2x256xf32> to vector<2x64xf32>
    %48 = vector.extract_strided_slice %45 {offsets = [0, 128], sizes = [2, 64], strides = [1, 1]} : vector<2x256xf32> to vector<2x64xf32>
    %49 = vector.extract_strided_slice %45 {offsets = [0, 192], sizes = [2, 64], strides = [1, 1]} : vector<2x256xf32> to vector<2x64xf32>
    %50 = arith.mulf %47, %23 : vector<2x64xf32>
    %51 = arith.mulf %46, %48 : vector<2x64xf32>
    %52 = arith.addf %50, %51 : vector<2x64xf32>
    %53 = math.tanh %52 : vector<2x64xf32>
    %54 = arith.mulf %49, %53 : vector<2x64xf32>
    %55 = arith.truncf %54 : vector<2x64xf32> to vector<2x64xbf16>
    %cst_22 = arith.constant dense<0.000000e+00> : vector<2x128xf32>
    %56 = tpu.matmul %55, %2, %cst_22 {dimension_numbers = #tpu.dot_dimension_numbers<[1], [0], [0], [1], [0, 0, 1, 1], [], []>} : vector<2x64xbf16>, vector<64x128xbf16>, vector<2x128xf32> -> vector<2x128xf32>
    %57 = arith.addf %56, %32 : vector<2x128xf32>
    %58 = arith.addf %57, %9 : vector<2x128xf32>
    %59 = arith.addf %58, %58 : vector<2x128xf32>
    %60 = arith.select %21, %59, %58 : vector<2x128xi1>, vector<2x128xf32>
    %61 = arith.negf %60 : vector<2x128xf32>
    %62 = math.exp %61 : vector<2x128xf32>
    %cst_23 = arith.constant 1.000000e+00 : f32
    %63 = vector.broadcast %cst_23 : f32 to vector<2x128xf32>
    %64 = arith.addf %63, %62 : vector<2x128xf32>
    %65 = arith.divf %63, %64 : vector<2x128xf32>
    %66 = arith.addf %65, %65 : vector<2x128xf32>
    %cst_24 = arith.constant 1.000000e+00 : f32
    %67 = vector.broadcast %cst_24 : f32 to vector<2x128xf32>
    %68 = arith.subf %66, %67 : vector<2x128xf32>
    %69 = arith.select %21, %68, %65 : vector<2x128xi1>, vector<2x128xf32>
    %70 = vector.extract_strided_slice %69 {offsets = [0, 0], sizes = [2, 32], strides = [1, 1]} : vector<2x128xf32> to vector<2x32xf32>
    %71 = vector.extract_strided_slice %69 {offsets = [0, 32], sizes = [2, 32], strides = [1, 1]} : vector<2x128xf32> to vector<2x32xf32>
    %72 = vector.extract_strided_slice %69 {offsets = [0, 64], sizes = [2, 32], strides = [1, 1]} : vector<2x128xf32> to vector<2x32xf32>
    %73 = vector.extract_strided_slice %69 {offsets = [0, 96], sizes = [2, 32], strides = [1, 1]} : vector<2x128xf32> to vector<2x32xf32>
    %74 = arith.mulf %71, %25 : vector<2x32xf32>
    %75 = arith.mulf %70, %72 : vector<2x32xf32>
    %76 = arith.addf %74, %75 : vector<2x32xf32>
    %77 = math.tanh %76 : vector<2x32xf32>
    %78 = arith.mulf %73, %77 : vector<2x32xf32>
    %79 = arith.truncf %78 : vector<2x32xf32> to vector<2x32xbf16>
    %c1 = arith.constant 1 : index
    %c0_25 = arith.constant 0 : index
    %c0_26 = arith.constant 0 : index
    %80 = vector.load %arg1[%c1, %c0_25, %c0_26] : memref<8x2x4xbf16, #tpu.memory_space<vmem>>, vector<1x2x4xbf16>
    %81 = vector.shape_cast %80 : vector<1x2x4xbf16> to vector<2x4xbf16>
    %cst_27 = arith.constant dense<0.000000e+00> : vector<2x256xf32>
    %82 = tpu.matmul %81, %0, %cst_27 {dimension_numbers = #tpu.dot_dimension_numbers<[1], [0], [0], [1], [0, 0, 1, 1], [], []>} : vector<2x4xbf16>, vector<4x256xbf16>, vector<2x256xf32> -> vector<2x256xf32>
    %83 = arith.addf %82, %6 : vector<2x256xf32>
    %cst_28 = arith.constant dense<0.000000e+00> : vector<2x128xf32>
    %84 = tpu.matmul %79, %3, %cst_28 {dimension_numbers = #tpu.dot_dimension_numbers<[1], [0], [0], [1], [0, 0, 1, 1], [], []>} : vector<2x32xbf16>, vector<32x128xbf16>, vector<2x128xf32> -> vector<2x128xf32>
    %cst_29 = arith.constant dense<0.000000e+00> : vector<2x256xf32>
    %85 = tpu.matmul %55, %1, %cst_29 {dimension_numbers = #tpu.dot_dimension_numbers<[1], [0], [0], [1], [0, 0, 1, 1], [], []>} : vector<2x64xbf16>, vector<64x256xbf16>, vector<2x256xf32> -> vector<2x256xf32>
    %86 = arith.addf %83, %85 : vector<2x256xf32>
    %87 = arith.addf %86, %86 : vector<2x256xf32>
    %88 = arith.select %15, %87, %86 : vector<2x256xi1>, vector<2x256xf32>
    %89 = arith.negf %88 : vector<2x256xf32>
    %90 = math.exp %89 : vector<2x256xf32>
    %cst_30 = arith.constant 1.000000e+00 : f32
    %91 = vector.broadcast %cst_30 : f32 to vector<2x256xf32>
    %92 = arith.addf %91, %90 : vector<2x256xf32>
    %93 = arith.divf %91, %92 : vector<2x256xf32>
    %94 = arith.addf %93, %93 : vector<2x256xf32>
    %cst_31 = arith.constant 1.000000e+00 : f32
    %95 = vector.broadcast %cst_31 : f32 to vector<2x256xf32>
    %96 = arith.subf %94, %95 : vector<2x256xf32>
    %97 = arith.select %15, %96, %93 : vector<2x256xi1>, vector<2x256xf32>
    %98 = vector.extract_strided_slice %97 {offsets = [0, 0], sizes = [2, 64], strides = [1, 1]} : vector<2x256xf32> to vector<2x64xf32>
    %99 = vector.extract_strided_slice %97 {offsets = [0, 64], sizes = [2, 64], strides = [1, 1]} : vector<2x256xf32> to vector<2x64xf32>
    %100 = vector.extract_strided_slice %97 {offsets = [0, 128], sizes = [2, 64], strides = [1, 1]} : vector<2x256xf32> to vector<2x64xf32>
    %101 = vector.extract_strided_slice %97 {offsets = [0, 192], sizes = [2, 64], strides = [1, 1]} : vector<2x256xf32> to vector<2x64xf32>
    %102 = arith.mulf %99, %52 : vector<2x64xf32>
    %103 = arith.mulf %98, %100 : vector<2x64xf32>
    %104 = arith.addf %102, %103 : vector<2x64xf32>
    %105 = math.tanh %104 : vector<2x64xf32>
    %106 = arith.mulf %101, %105 : vector<2x64xf32>
    %107 = arith.truncf %106 : vector<2x64xf32> to vector<2x64xbf16>
    %cst_32 = arith.constant dense<0.000000e+00> : vector<2x128xf32>
    %108 = tpu.matmul %107, %2, %cst_32 {dimension_numbers = #tpu.dot_dimension_numbers<[1], [0], [0], [1], [0, 0, 1, 1], [], []>} : vector<2x64xbf16>, vector<64x128xbf16>, vector<2x128xf32> -> vector<2x128xf32>
    %109 = arith.addf %108, %84 : vector<2x128xf32>
    %110 = arith.addf %109, %9 : vector<2x128xf32>
    %111 = arith.addf %110, %110 : vector<2x128xf32>
    %112 = arith.select %21, %111, %110 : vector<2x128xi1>, vector<2x128xf32>
    %113 = arith.negf %112 : vector<2x128xf32>
    %114 = math.exp %113 : vector<2x128xf32>
    %cst_33 = arith.constant 1.000000e+00 : f32
    %115 = vector.broadcast %cst_33 : f32 to vector<2x128xf32>
    %116 = arith.addf %115, %114 : vector<2x128xf32>
    %117 = arith.divf %115, %116 : vector<2x128xf32>
    %118 = arith.addf %117, %117 : vector<2x128xf32>
    %cst_34 = arith.constant 1.000000e+00 : f32
    %119 = vector.broadcast %cst_34 : f32 to vector<2x128xf32>
    %120 = arith.subf %118, %119 : vector<2x128xf32>
    %121 = arith.select %21, %120, %117 : vector<2x128xi1>, vector<2x128xf32>
    %122 = vector.extract_strided_slice %121 {offsets = [0, 0], sizes = [2, 32], strides = [1, 1]} : vector<2x128xf32> to vector<2x32xf32>
    %123 = vector.extract_strided_slice %121 {offsets = [0, 32], sizes = [2, 32], strides = [1, 1]} : vector<2x128xf32> to vector<2x32xf32>
    %124 = vector.extract_strided_slice %121 {offsets = [0, 64], sizes = [2, 32], strides = [1, 1]} : vector<2x128xf32> to vector<2x32xf32>
    %125 = vector.extract_strided_slice %121 {offsets = [0, 96], sizes = [2, 32], strides = [1, 1]} : vector<2x128xf32> to vector<2x32xf32>
    %126 = arith.mulf %123, %76 : vector<2x32xf32>
    %127 = arith.mulf %122, %124 : vector<2x32xf32>
    %128 = arith.addf %126, %127 : vector<2x32xf32>
    %129 = math.tanh %128 : vector<2x32xf32>
    %130 = arith.mulf %125, %129 : vector<2x32xf32>
    %131 = arith.truncf %130 : vector<2x32xf32> to vector<2x32xbf16>
    %c2 = arith.constant 2 : index
    %c0_35 = arith.constant 0 : index
    %c0_36 = arith.constant 0 : index
    %132 = vector.load %arg1[%c2, %c0_35, %c0_36] : memref<8x2x4xbf16, #tpu.memory_space<vmem>>, vector<1x2x4xbf16>
    %133 = vector.shape_cast %132 : vector<1x2x4xbf16> to vector<2x4xbf16>
    %cst_37 = arith.constant dense<0.000000e+00> : vector<2x256xf32>
    %134 = tpu.matmul %133, %0, %cst_37 {dimension_numbers = #tpu.dot_dimension_numbers<[1], [0], [0], [1], [0, 0, 1, 1], [], []>} : vector<2x4xbf16>, vector<4x256xbf16>, vector<2x256xf32> -> vector<2x256xf32>
    %135 = arith.addf %134, %6 : vector<2x256xf32>
    %cst_38 = arith.constant dense<0.000000e+00> : vector<2x128xf32>
    %136 = tpu.matmul %131, %3, %cst_38 {dimension_numbers = #tpu.dot_dimension_numbers<[1], [0], [0], [1], [0, 0, 1, 1], [], []>} : vector<2x32xbf16>, vector<32x128xbf16>, vector<2x128xf32> -> vector<2x128xf32>
    %cst_39 = arith.constant dense<0.000000e+00> : vector<2x256xf32>
    %137 = tpu.matmul %107, %1, %cst_39 {dimension_numbers = #tpu.dot_dimension_numbers<[1], [0], [0], [1], [0, 0, 1, 1], [], []>} : vector<2x64xbf16>, vector<64x256xbf16>, vector<2x256xf32> -> vector<2x256xf32>
    %138 = arith.addf %135, %137 : vector<2x256xf32>
    %139 = arith.addf %138, %138 : vector<2x256xf32>
    %140 = arith.select %15, %139, %138 : vector<2x256xi1>, vector<2x256xf32>
    %141 = arith.negf %140 : vector<2x256xf32>
    %142 = math.exp %141 : vector<2x256xf32>
    %cst_40 = arith.constant 1.000000e+00 : f32
    %143 = vector.broadcast %cst_40 : f32 to vector<2x256xf32>
    %144 = arith.addf %143, %142 : vector<2x256xf32>
    %145 = arith.divf %143, %144 : vector<2x256xf32>
    %146 = arith.addf %145, %145 : vector<2x256xf32>
    %cst_41 = arith.constant 1.000000e+00 : f32
    %147 = vector.broadcast %cst_41 : f32 to vector<2x256xf32>
    %148 = arith.subf %146, %147 : vector<2x256xf32>
    %149 = arith.select %15, %148, %145 : vector<2x256xi1>, vector<2x256xf32>
    %150 = vector.extract_strided_slice %149 {offsets = [0, 0], sizes = [2, 64], strides = [1, 1]} : vector<2x256xf32> to vector<2x64xf32>
    %151 = vector.extract_strided_slice %149 {offsets = [0, 64], sizes = [2, 64], strides = [1, 1]} : vector<2x256xf32> to vector<2x64xf32>
    %152 = vector.extract_strided_slice %149 {offsets = [0, 128], sizes = [2, 64], strides = [1, 1]} : vector<2x256xf32> to vector<2x64xf32>
    %153 = vector.extract_strided_slice %149 {offsets = [0, 192], sizes = [2, 64], strides = [1, 1]} : vector<2x256xf32> to vector<2x64xf32>
    %154 = arith.mulf %151, %104 : vector<2x64xf32>
    %155 = arith.mulf %150, %152 : vector<2x64xf32>
    %156 = arith.addf %154, %155 : vector<2x64xf32>
    %157 = math.tanh %156 : vector<2x64xf32>
    %158 = arith.mulf %153, %157 : vector<2x64xf32>
    %159 = arith.truncf %158 : vector<2x64xf32> to vector<2x64xbf16>
    %cst_42 = arith.constant dense<0.000000e+00> : vector<2x128xf32>
    %160 = tpu.matmul %159, %2, %cst_42 {dimension_numbers = #tpu.dot_dimension_numbers<[1], [0], [0], [1], [0, 0, 1, 1], [], []>} : vector<2x64xbf16>, vector<64x128xbf16>, vector<2x128xf32> -> vector<2x128xf32>
    %161 = arith.addf %160, %136 : vector<2x128xf32>
    %162 = arith.addf %161, %9 : vector<2x128xf32>
    %163 = arith.addf %162, %162 : vector<2x128xf32>
    %164 = arith.select %21, %163, %162 : vector<2x128xi1>, vector<2x128xf32>
    %165 = arith.negf %164 : vector<2x128xf32>
    %166 = math.exp %165 : vector<2x128xf32>
    %cst_43 = arith.constant 1.000000e+00 : f32
    %167 = vector.broadcast %cst_43 : f32 to vector<2x128xf32>
    %168 = arith.addf %167, %166 : vector<2x128xf32>
    %169 = arith.divf %167, %168 : vector<2x128xf32>
    %170 = arith.addf %169, %169 : vector<2x128xf32>
    %cst_44 = arith.constant 1.000000e+00 : f32
    %171 = vector.broadcast %cst_44 : f32 to vector<2x128xf32>
    %172 = arith.subf %170, %171 : vector<2x128xf32>
    %173 = arith.select %21, %172, %169 : vector<2x128xi1>, vector<2x128xf32>
    %174 = vector.extract_strided_slice %173 {offsets = [0, 0], sizes = [2, 32], strides = [1, 1]} : vector<2x128xf32> to vector<2x32xf32>
    %175 = vector.extract_strided_slice %173 {offsets = [0, 32], sizes = [2, 32], strides = [1, 1]} : vector<2x128xf32> to vector<2x32xf32>
    %176 = vector.extract_strided_slice %173 {offsets = [0, 64], sizes = [2, 32], strides = [1, 1]} : vector<2x128xf32> to vector<2x32xf32>
    %177 = vector.extract_strided_slice %173 {offsets = [0, 96], sizes = [2, 32], strides = [1, 1]} : vector<2x128xf32> to vector<2x32xf32>
    %178 = arith.mulf %175, %128 : vector<2x32xf32>
    %179 = arith.mulf %174, %176 : vector<2x32xf32>
    %180 = arith.addf %178, %179 : vector<2x32xf32>
    %181 = math.tanh %180 : vector<2x32xf32>
    %182 = arith.mulf %177, %181 : vector<2x32xf32>
    %183 = arith.truncf %182 : vector<2x32xf32> to vector<2x32xbf16>
    %c3 = arith.constant 3 : index
    %c0_45 = arith.constant 0 : index
    %c0_46 = arith.constant 0 : index
    %184 = vector.load %arg1[%c3, %c0_45, %c0_46] : memref<8x2x4xbf16, #tpu.memory_space<vmem>>, vector<1x2x4xbf16>
    %185 = vector.shape_cast %184 : vector<1x2x4xbf16> to vector<2x4xbf16>
    %cst_47 = arith.constant dense<0.000000e+00> : vector<2x256xf32>
    %186 = tpu.matmul %185, %0, %cst_47 {dimension_numbers = #tpu.dot_dimension_numbers<[1], [0], [0], [1], [0, 0, 1, 1], [], []>} : vector<2x4xbf16>, vector<4x256xbf16>, vector<2x256xf32> -> vector<2x256xf32>
    %187 = arith.addf %186, %6 : vector<2x256xf32>
    %cst_48 = arith.constant dense<0.000000e+00> : vector<2x128xf32>
    %188 = tpu.matmul %183, %3, %cst_48 {dimension_numbers = #tpu.dot_dimension_numbers<[1], [0], [0], [1], [0, 0, 1, 1], [], []>} : vector<2x32xbf16>, vector<32x128xbf16>, vector<2x128xf32> -> vector<2x128xf32>
    %cst_49 = arith.constant dense<0.000000e+00> : vector<2x256xf32>
    %189 = tpu.matmul %159, %1, %cst_49 {dimension_numbers = #tpu.dot_dimension_numbers<[1], [0], [0], [1], [0, 0, 1, 1], [], []>} : vector<2x64xbf16>, vector<64x256xbf16>, vector<2x256xf32> -> vector<2x256xf32>
    %190 = arith.addf %187, %189 : vector<2x256xf32>
    %191 = arith.addf %190, %190 : vector<2x256xf32>
    %192 = arith.select %15, %191, %190 : vector<2x256xi1>, vector<2x256xf32>
    %193 = arith.negf %192 : vector<2x256xf32>
    %194 = math.exp %193 : vector<2x256xf32>
    %cst_50 = arith.constant 1.000000e+00 : f32
    %195 = vector.broadcast %cst_50 : f32 to vector<2x256xf32>
    %196 = arith.addf %195, %194 : vector<2x256xf32>
    %197 = arith.divf %195, %196 : vector<2x256xf32>
    %198 = arith.addf %197, %197 : vector<2x256xf32>
    %cst_51 = arith.constant 1.000000e+00 : f32
    %199 = vector.broadcast %cst_51 : f32 to vector<2x256xf32>
    %200 = arith.subf %198, %199 : vector<2x256xf32>
    %201 = arith.select %15, %200, %197 : vector<2x256xi1>, vector<2x256xf32>
    %202 = vector.extract_strided_slice %201 {offsets = [0, 0], sizes = [2, 64], strides = [1, 1]} : vector<2x256xf32> to vector<2x64xf32>
    %203 = vector.extract_strided_slice %201 {offsets = [0, 64], sizes = [2, 64], strides = [1, 1]} : vector<2x256xf32> to vector<2x64xf32>
    %204 = vector.extract_strided_slice %201 {offsets = [0, 128], sizes = [2, 64], strides = [1, 1]} : vector<2x256xf32> to vector<2x64xf32>
    %205 = vector.extract_strided_slice %201 {offsets = [0, 192], sizes = [2, 64], strides = [1, 1]} : vector<2x256xf32> to vector<2x64xf32>
    %206 = arith.mulf %203, %156 : vector<2x64xf32>
    %207 = arith.mulf %202, %204 : vector<2x64xf32>
    %208 = arith.addf %206, %207 : vector<2x64xf32>
    %209 = math.tanh %208 : vector<2x64xf32>
    %210 = arith.mulf %205, %209 : vector<2x64xf32>
    %211 = arith.truncf %210 : vector<2x64xf32> to vector<2x64xbf16>
    %cst_52 = arith.constant dense<0.000000e+00> : vector<2x128xf32>
    %212 = tpu.matmul %211, %2, %cst_52 {dimension_numbers = #tpu.dot_dimension_numbers<[1], [0], [0], [1], [0, 0, 1, 1], [], []>} : vector<2x64xbf16>, vector<64x128xbf16>, vector<2x128xf32> -> vector<2x128xf32>
    %213 = arith.addf %212, %188 : vector<2x128xf32>
    %214 = arith.addf %213, %9 : vector<2x128xf32>
    %215 = arith.addf %214, %214 : vector<2x128xf32>
    %216 = arith.select %21, %215, %214 : vector<2x128xi1>, vector<2x128xf32>
    %217 = arith.negf %216 : vector<2x128xf32>
    %218 = math.exp %217 : vector<2x128xf32>
    %cst_53 = arith.constant 1.000000e+00 : f32
    %219 = vector.broadcast %cst_53 : f32 to vector<2x128xf32>
    %220 = arith.addf %219, %218 : vector<2x128xf32>
    %221 = arith.divf %219, %220 : vector<2x128xf32>
    %222 = arith.addf %221, %221 : vector<2x128xf32>
    %cst_54 = arith.constant 1.000000e+00 : f32
    %223 = vector.broadcast %cst_54 : f32 to vector<2x128xf32>
    %224 = arith.subf %222, %223 : vector<2x128xf32>
    %225 = arith.select %21, %224, %221 : vector<2x128xi1>, vector<2x128xf32>
    %226 = vector.extract_strided_slice %225 {offsets = [0, 0], sizes = [2, 32], strides = [1, 1]} : vector<2x128xf32> to vector<2x32xf32>
    %227 = vector.extract_strided_slice %225 {offsets = [0, 32], sizes = [2, 32], strides = [1, 1]} : vector<2x128xf32> to vector<2x32xf32>
    %228 = vector.extract_strided_slice %225 {offsets = [0, 64], sizes = [2, 32], strides = [1, 1]} : vector<2x128xf32> to vector<2x32xf32>
    %229 = vector.extract_strided_slice %225 {offsets = [0, 96], sizes = [2, 32], strides = [1, 1]} : vector<2x128xf32> to vector<2x32xf32>
    %230 = arith.mulf %227, %180 : vector<2x32xf32>
    %231 = arith.mulf %226, %228 : vector<2x32xf32>
    %232 = arith.addf %230, %231 : vector<2x32xf32>
    %233 = math.tanh %232 : vector<2x32xf32>
    %234 = arith.mulf %229, %233 : vector<2x32xf32>
    %235 = arith.truncf %234 : vector<2x32xf32> to vector<2x32xbf16>
    %c4 = arith.constant 4 : index
    %c0_55 = arith.constant 0 : index
    %c0_56 = arith.constant 0 : index
    %236 = vector.load %arg1[%c4, %c0_55, %c0_56] : memref<8x2x4xbf16, #tpu.memory_space<vmem>>, vector<1x2x4xbf16>
    %237 = vector.shape_cast %236 : vector<1x2x4xbf16> to vector<2x4xbf16>
    %cst_57 = arith.constant dense<0.000000e+00> : vector<2x256xf32>
    %238 = tpu.matmul %237, %0, %cst_57 {dimension_numbers = #tpu.dot_dimension_numbers<[1], [0], [0], [1], [0, 0, 1, 1], [], []>} : vector<2x4xbf16>, vector<4x256xbf16>, vector<2x256xf32> -> vector<2x256xf32>
    %239 = arith.addf %238, %6 : vector<2x256xf32>
    %cst_58 = arith.constant dense<0.000000e+00> : vector<2x128xf32>
    %240 = tpu.matmul %235, %3, %cst_58 {dimension_numbers = #tpu.dot_dimension_numbers<[1], [0], [0], [1], [0, 0, 1, 1], [], []>} : vector<2x32xbf16>, vector<32x128xbf16>, vector<2x128xf32> -> vector<2x128xf32>
    %cst_59 = arith.constant dense<0.000000e+00> : vector<2x256xf32>
    %241 = tpu.matmul %211, %1, %cst_59 {dimension_numbers = #tpu.dot_dimension_numbers<[1], [0], [0], [1], [0, 0, 1, 1], [], []>} : vector<2x64xbf16>, vector<64x256xbf16>, vector<2x256xf32> -> vector<2x256xf32>
    %242 = arith.addf %239, %241 : vector<2x256xf32>
    %243 = arith.addf %242, %242 : vector<2x256xf32>
    %244 = arith.select %15, %243, %242 : vector<2x256xi1>, vector<2x256xf32>
    %245 = arith.negf %244 : vector<2x256xf32>
    %246 = math.exp %245 : vector<2x256xf32>
    %cst_60 = arith.constant 1.000000e+00 : f32
    %247 = vector.broadcast %cst_60 : f32 to vector<2x256xf32>
    %248 = arith.addf %247, %246 : vector<2x256xf32>
    %249 = arith.divf %247, %248 : vector<2x256xf32>
    %250 = arith.addf %249, %249 : vector<2x256xf32>
    %cst_61 = arith.constant 1.000000e+00 : f32
    %251 = vector.broadcast %cst_61 : f32 to vector<2x256xf32>
    %252 = arith.subf %250, %251 : vector<2x256xf32>
    %253 = arith.select %15, %252, %249 : vector<2x256xi1>, vector<2x256xf32>
    %254 = vector.extract_strided_slice %253 {offsets = [0, 0], sizes = [2, 64], strides = [1, 1]} : vector<2x256xf32> to vector<2x64xf32>
    %255 = vector.extract_strided_slice %253 {offsets = [0, 64], sizes = [2, 64], strides = [1, 1]} : vector<2x256xf32> to vector<2x64xf32>
    %256 = vector.extract_strided_slice %253 {offsets = [0, 128], sizes = [2, 64], strides = [1, 1]} : vector<2x256xf32> to vector<2x64xf32>
    %257 = vector.extract_strided_slice %253 {offsets = [0, 192], sizes = [2, 64], strides = [1, 1]} : vector<2x256xf32> to vector<2x64xf32>
    %258 = arith.mulf %255, %208 : vector<2x64xf32>
    %259 = arith.mulf %254, %256 : vector<2x64xf32>
    %260 = arith.addf %258, %259 : vector<2x64xf32>
    %261 = math.tanh %260 : vector<2x64xf32>
    %262 = arith.mulf %257, %261 : vector<2x64xf32>
    %263 = arith.truncf %262 : vector<2x64xf32> to vector<2x64xbf16>
    %cst_62 = arith.constant dense<0.000000e+00> : vector<2x128xf32>
    %264 = tpu.matmul %263, %2, %cst_62 {dimension_numbers = #tpu.dot_dimension_numbers<[1], [0], [0], [1], [0, 0, 1, 1], [], []>} : vector<2x64xbf16>, vector<64x128xbf16>, vector<2x128xf32> -> vector<2x128xf32>
    %265 = arith.addf %264, %240 : vector<2x128xf32>
    %266 = arith.addf %265, %9 : vector<2x128xf32>
    %267 = arith.addf %266, %266 : vector<2x128xf32>
    %268 = arith.select %21, %267, %266 : vector<2x128xi1>, vector<2x128xf32>
    %269 = arith.negf %268 : vector<2x128xf32>
    %270 = math.exp %269 : vector<2x128xf32>
    %cst_63 = arith.constant 1.000000e+00 : f32
    %271 = vector.broadcast %cst_63 : f32 to vector<2x128xf32>
    %272 = arith.addf %271, %270 : vector<2x128xf32>
    %273 = arith.divf %271, %272 : vector<2x128xf32>
    %274 = arith.addf %273, %273 : vector<2x128xf32>
    %cst_64 = arith.constant 1.000000e+00 : f32
    %275 = vector.broadcast %cst_64 : f32 to vector<2x128xf32>
    %276 = arith.subf %274, %275 : vector<2x128xf32>
    %277 = arith.select %21, %276, %273 : vector<2x128xi1>, vector<2x128xf32>
    %278 = vector.extract_strided_slice %277 {offsets = [0, 0], sizes = [2, 32], strides = [1, 1]} : vector<2x128xf32> to vector<2x32xf32>
    %279 = vector.extract_strided_slice %277 {offsets = [0, 32], sizes = [2, 32], strides = [1, 1]} : vector<2x128xf32> to vector<2x32xf32>
    %280 = vector.extract_strided_slice %277 {offsets = [0, 64], sizes = [2, 32], strides = [1, 1]} : vector<2x128xf32> to vector<2x32xf32>
    %281 = vector.extract_strided_slice %277 {offsets = [0, 96], sizes = [2, 32], strides = [1, 1]} : vector<2x128xf32> to vector<2x32xf32>
    %282 = arith.mulf %279, %232 : vector<2x32xf32>
    %283 = arith.mulf %278, %280 : vector<2x32xf32>
    %284 = arith.addf %282, %283 : vector<2x32xf32>
    %285 = math.tanh %284 : vector<2x32xf32>
    %286 = arith.mulf %281, %285 : vector<2x32xf32>
    %287 = arith.truncf %286 : vector<2x32xf32> to vector<2x32xbf16>
    %c5 = arith.constant 5 : index
    %c0_65 = arith.constant 0 : index
    %c0_66 = arith.constant 0 : index
    %288 = vector.load %arg1[%c5, %c0_65, %c0_66] : memref<8x2x4xbf16, #tpu.memory_space<vmem>>, vector<1x2x4xbf16>
    %289 = vector.shape_cast %288 : vector<1x2x4xbf16> to vector<2x4xbf16>
    %cst_67 = arith.constant dense<0.000000e+00> : vector<2x256xf32>
    %290 = tpu.matmul %289, %0, %cst_67 {dimension_numbers = #tpu.dot_dimension_numbers<[1], [0], [0], [1], [0, 0, 1, 1], [], []>} : vector<2x4xbf16>, vector<4x256xbf16>, vector<2x256xf32> -> vector<2x256xf32>
    %291 = arith.addf %290, %6 : vector<2x256xf32>
    %cst_68 = arith.constant dense<0.000000e+00> : vector<2x128xf32>
    %292 = tpu.matmul %287, %3, %cst_68 {dimension_numbers = #tpu.dot_dimension_numbers<[1], [0], [0], [1], [0, 0, 1, 1], [], []>} : vector<2x32xbf16>, vector<32x128xbf16>, vector<2x128xf32> -> vector<2x128xf32>
    %cst_69 = arith.constant dense<0.000000e+00> : vector<2x256xf32>
    %293 = tpu.matmul %263, %1, %cst_69 {dimension_numbers = #tpu.dot_dimension_numbers<[1], [0], [0], [1], [0, 0, 1, 1], [], []>} : vector<2x64xbf16>, vector<64x256xbf16>, vector<2x256xf32> -> vector<2x256xf32>
    %294 = arith.addf %291, %293 : vector<2x256xf32>
    %295 = arith.addf %294, %294 : vector<2x256xf32>
    %296 = arith.select %15, %295, %294 : vector<2x256xi1>, vector<2x256xf32>
    %297 = arith.negf %296 : vector<2x256xf32>
    %298 = math.exp %297 : vector<2x256xf32>
    %cst_70 = arith.constant 1.000000e+00 : f32
    %299 = vector.broadcast %cst_70 : f32 to vector<2x256xf32>
    %300 = arith.addf %299, %298 : vector<2x256xf32>
    %301 = arith.divf %299, %300 : vector<2x256xf32>
    %302 = arith.addf %301, %301 : vector<2x256xf32>
    %cst_71 = arith.constant 1.000000e+00 : f32
    %303 = vector.broadcast %cst_71 : f32 to vector<2x256xf32>
    %304 = arith.subf %302, %303 : vector<2x256xf32>
    %305 = arith.select %15, %304, %301 : vector<2x256xi1>, vector<2x256xf32>
    %306 = vector.extract_strided_slice %305 {offsets = [0, 0], sizes = [2, 64], strides = [1, 1]} : vector<2x256xf32> to vector<2x64xf32>
    %307 = vector.extract_strided_slice %305 {offsets = [0, 64], sizes = [2, 64], strides = [1, 1]} : vector<2x256xf32> to vector<2x64xf32>
    %308 = vector.extract_strided_slice %305 {offsets = [0, 128], sizes = [2, 64], strides = [1, 1]} : vector<2x256xf32> to vector<2x64xf32>
    %309 = vector.extract_strided_slice %305 {offsets = [0, 192], sizes = [2, 64], strides = [1, 1]} : vector<2x256xf32> to vector<2x64xf32>
    %310 = arith.mulf %307, %260 : vector<2x64xf32>
    %311 = arith.mulf %306, %308 : vector<2x64xf32>
    %312 = arith.addf %310, %311 : vector<2x64xf32>
    %313 = math.tanh %312 : vector<2x64xf32>
    %314 = arith.mulf %309, %313 : vector<2x64xf32>
    %315 = arith.truncf %314 : vector<2x64xf32> to vector<2x64xbf16>
    %cst_72 = arith.constant dense<0.000000e+00> : vector<2x128xf32>
    %316 = tpu.matmul %315, %2, %cst_72 {dimension_numbers = #tpu.dot_dimension_numbers<[1], [0], [0], [1], [0, 0, 1, 1], [], []>} : vector<2x64xbf16>, vector<64x128xbf16>, vector<2x128xf32> -> vector<2x128xf32>
    %317 = arith.addf %316, %292 : vector<2x128xf32>
    %318 = arith.addf %317, %9 : vector<2x128xf32>
    %319 = arith.addf %318, %318 : vector<2x128xf32>
    %320 = arith.select %21, %319, %318 : vector<2x128xi1>, vector<2x128xf32>
    %321 = arith.negf %320 : vector<2x128xf32>
    %322 = math.exp %321 : vector<2x128xf32>
    %cst_73 = arith.constant 1.000000e+00 : f32
    %323 = vector.broadcast %cst_73 : f32 to vector<2x128xf32>
    %324 = arith.addf %323, %322 : vector<2x128xf32>
    %325 = arith.divf %323, %324 : vector<2x128xf32>
    %326 = arith.addf %325, %325 : vector<2x128xf32>
    %cst_74 = arith.constant 1.000000e+00 : f32
    %327 = vector.broadcast %cst_74 : f32 to vector<2x128xf32>
    %328 = arith.subf %326, %327 : vector<2x128xf32>
    %329 = arith.select %21, %328, %325 : vector<2x128xi1>, vector<2x128xf32>
    %330 = vector.extract_strided_slice %329 {offsets = [0, 0], sizes = [2, 32], strides = [1, 1]} : vector<2x128xf32> to vector<2x32xf32>
    %331 = vector.extract_strided_slice %329 {offsets = [0, 32], sizes = [2, 32], strides = [1, 1]} : vector<2x128xf32> to vector<2x32xf32>
    %332 = vector.extract_strided_slice %329 {offsets = [0, 64], sizes = [2, 32], strides = [1, 1]} : vector<2x128xf32> to vector<2x32xf32>
    %333 = vector.extract_strided_slice %329 {offsets = [0, 96], sizes = [2, 32], strides = [1, 1]} : vector<2x128xf32> to vector<2x32xf32>
    %334 = arith.mulf %331, %284 : vector<2x32xf32>
    %335 = arith.mulf %330, %332 : vector<2x32xf32>
    %336 = arith.addf %334, %335 : vector<2x32xf32>
    %337 = math.tanh %336 : vector<2x32xf32>
    %338 = arith.mulf %333, %337 : vector<2x32xf32>
    %339 = arith.truncf %338 : vector<2x32xf32> to vector<2x32xbf16>
    %c6 = arith.constant 6 : index
    %c0_75 = arith.constant 0 : index
    %c0_76 = arith.constant 0 : index
    %340 = vector.load %arg1[%c6, %c0_75, %c0_76] : memref<8x2x4xbf16, #tpu.memory_space<vmem>>, vector<1x2x4xbf16>
    %341 = vector.shape_cast %340 : vector<1x2x4xbf16> to vector<2x4xbf16>
    %cst_77 = arith.constant dense<0.000000e+00> : vector<2x256xf32>
    %342 = tpu.matmul %341, %0, %cst_77 {dimension_numbers = #tpu.dot_dimension_numbers<[1], [0], [0], [1], [0, 0, 1, 1], [], []>} : vector<2x4xbf16>, vector<4x256xbf16>, vector<2x256xf32> -> vector<2x256xf32>
    %343 = arith.addf %342, %6 : vector<2x256xf32>
    %cst_78 = arith.constant dense<0.000000e+00> : vector<2x128xf32>
    %344 = tpu.matmul %339, %3, %cst_78 {dimension_numbers = #tpu.dot_dimension_numbers<[1], [0], [0], [1], [0, 0, 1, 1], [], []>} : vector<2x32xbf16>, vector<32x128xbf16>, vector<2x128xf32> -> vector<2x128xf32>
    %cst_79 = arith.constant dense<0.000000e+00> : vector<2x256xf32>
    %345 = tpu.matmul %315, %1, %cst_79 {dimension_numbers = #tpu.dot_dimension_numbers<[1], [0], [0], [1], [0, 0, 1, 1], [], []>} : vector<2x64xbf16>, vector<64x256xbf16>, vector<2x256xf32> -> vector<2x256xf32>
    %346 = arith.addf %343, %345 : vector<2x256xf32>
    %347 = arith.addf %346, %346 : vector<2x256xf32>
    %348 = arith.select %15, %347, %346 : vector<2x256xi1>, vector<2x256xf32>
    %349 = arith.negf %348 : vector<2x256xf32>
    %350 = math.exp %349 : vector<2x256xf32>
    %cst_80 = arith.constant 1.000000e+00 : f32
    %351 = vector.broadcast %cst_80 : f32 to vector<2x256xf32>
    %352 = arith.addf %351, %350 : vector<2x256xf32>
    %353 = arith.divf %351, %352 : vector<2x256xf32>
    %354 = arith.addf %353, %353 : vector<2x256xf32>
    %cst_81 = arith.constant 1.000000e+00 : f32
    %355 = vector.broadcast %cst_81 : f32 to vector<2x256xf32>
    %356 = arith.subf %354, %355 : vector<2x256xf32>
    %357 = arith.select %15, %356, %353 : vector<2x256xi1>, vector<2x256xf32>
    %358 = vector.extract_strided_slice %357 {offsets = [0, 0], sizes = [2, 64], strides = [1, 1]} : vector<2x256xf32> to vector<2x64xf32>
    %359 = vector.extract_strided_slice %357 {offsets = [0, 64], sizes = [2, 64], strides = [1, 1]} : vector<2x256xf32> to vector<2x64xf32>
    %360 = vector.extract_strided_slice %357 {offsets = [0, 128], sizes = [2, 64], strides = [1, 1]} : vector<2x256xf32> to vector<2x64xf32>
    %361 = vector.extract_strided_slice %357 {offsets = [0, 192], sizes = [2, 64], strides = [1, 1]} : vector<2x256xf32> to vector<2x64xf32>
    %362 = arith.mulf %359, %312 : vector<2x64xf32>
    %363 = arith.mulf %358, %360 : vector<2x64xf32>
    %364 = arith.addf %362, %363 : vector<2x64xf32>
    %365 = math.tanh %364 : vector<2x64xf32>
    %366 = arith.mulf %361, %365 : vector<2x64xf32>
    %367 = arith.truncf %366 : vector<2x64xf32> to vector<2x64xbf16>
    %cst_82 = arith.constant dense<0.000000e+00> : vector<2x128xf32>
    %368 = tpu.matmul %367, %2, %cst_82 {dimension_numbers = #tpu.dot_dimension_numbers<[1], [0], [0], [1], [0, 0, 1, 1], [], []>} : vector<2x64xbf16>, vector<64x128xbf16>, vector<2x128xf32> -> vector<2x128xf32>
    %369 = arith.addf %368, %344 : vector<2x128xf32>
    %370 = arith.addf %369, %9 : vector<2x128xf32>
    %371 = arith.addf %370, %370 : vector<2x128xf32>
    %372 = arith.select %21, %371, %370 : vector<2x128xi1>, vector<2x128xf32>
    %373 = arith.negf %372 : vector<2x128xf32>
    %374 = math.exp %373 : vector<2x128xf32>
    %cst_83 = arith.constant 1.000000e+00 : f32
    %375 = vector.broadcast %cst_83 : f32 to vector<2x128xf32>
    %376 = arith.addf %375, %374 : vector<2x128xf32>
    %377 = arith.divf %375, %376 : vector<2x128xf32>
    %378 = arith.addf %377, %377 : vector<2x128xf32>
    %cst_84 = arith.constant 1.000000e+00 : f32
    %379 = vector.broadcast %cst_84 : f32 to vector<2x128xf32>
    %380 = arith.subf %378, %379 : vector<2x128xf32>
    %381 = arith.select %21, %380, %377 : vector<2x128xi1>, vector<2x128xf32>
    %382 = vector.extract_strided_slice %381 {offsets = [0, 0], sizes = [2, 32], strides = [1, 1]} : vector<2x128xf32> to vector<2x32xf32>
    %383 = vector.extract_strided_slice %381 {offsets = [0, 32], sizes = [2, 32], strides = [1, 1]} : vector<2x128xf32> to vector<2x32xf32>
    %384 = vector.extract_strided_slice %381 {offsets = [0, 64], sizes = [2, 32], strides = [1, 1]} : vector<2x128xf32> to vector<2x32xf32>
    %385 = vector.extract_strided_slice %381 {offsets = [0, 96], sizes = [2, 32], strides = [1, 1]} : vector<2x128xf32> to vector<2x32xf32>
    %386 = arith.mulf %383, %336 : vector<2x32xf32>
    %387 = arith.mulf %382, %384 : vector<2x32xf32>
    %388 = arith.addf %386, %387 : vector<2x32xf32>
    %389 = math.tanh %388 : vector<2x32xf32>
    %390 = arith.mulf %385, %389 : vector<2x32xf32>
    %391 = arith.truncf %390 : vector<2x32xf32> to vector<2x32xbf16>
    %c7 = arith.constant 7 : index
    %c0_85 = arith.constant 0 : index
    %c0_86 = arith.constant 0 : index
    %392 = vector.load %arg1[%c7, %c0_85, %c0_86] : memref<8x2x4xbf16, #tpu.memory_space<vmem>>, vector<1x2x4xbf16>
    %393 = vector.shape_cast %392 : vector<1x2x4xbf16> to vector<2x4xbf16>
    %cst_87 = arith.constant dense<0.000000e+00> : vector<2x256xf32>
    %394 = tpu.matmul %393, %0, %cst_87 {dimension_numbers = #tpu.dot_dimension_numbers<[1], [0], [0], [1], [0, 0, 1, 1], [], []>} : vector<2x4xbf16>, vector<4x256xbf16>, vector<2x256xf32> -> vector<2x256xf32>
    %395 = arith.addf %394, %6 : vector<2x256xf32>
    %cst_88 = arith.constant dense<0.000000e+00> : vector<2x128xf32>
    %396 = tpu.matmul %391, %3, %cst_88 {dimension_numbers = #tpu.dot_dimension_numbers<[1], [0], [0], [1], [0, 0, 1, 1], [], []>} : vector<2x32xbf16>, vector<32x128xbf16>, vector<2x128xf32> -> vector<2x128xf32>
    %cst_89 = arith.constant dense<0.000000e+00> : vector<2x256xf32>
    %397 = tpu.matmul %367, %1, %cst_89 {dimension_numbers = #tpu.dot_dimension_numbers<[1], [0], [0], [1], [0, 0, 1, 1], [], []>} : vector<2x64xbf16>, vector<64x256xbf16>, vector<2x256xf32> -> vector<2x256xf32>
    %398 = arith.addf %395, %397 : vector<2x256xf32>
    %399 = arith.addf %398, %398 : vector<2x256xf32>
    %400 = arith.select %15, %399, %398 : vector<2x256xi1>, vector<2x256xf32>
    %401 = arith.negf %400 : vector<2x256xf32>
    %402 = math.exp %401 : vector<2x256xf32>
    %cst_90 = arith.constant 1.000000e+00 : f32
    %403 = vector.broadcast %cst_90 : f32 to vector<2x256xf32>
    %404 = arith.addf %403, %402 : vector<2x256xf32>
    %405 = arith.divf %403, %404 : vector<2x256xf32>
    %406 = arith.addf %405, %405 : vector<2x256xf32>
    %cst_91 = arith.constant 1.000000e+00 : f32
    %407 = vector.broadcast %cst_91 : f32 to vector<2x256xf32>
    %408 = arith.subf %406, %407 : vector<2x256xf32>
    %409 = arith.select %15, %408, %405 : vector<2x256xi1>, vector<2x256xf32>
    %410 = vector.extract_strided_slice %409 {offsets = [0, 0], sizes = [2, 64], strides = [1, 1]} : vector<2x256xf32> to vector<2x64xf32>
    %411 = vector.extract_strided_slice %409 {offsets = [0, 64], sizes = [2, 64], strides = [1, 1]} : vector<2x256xf32> to vector<2x64xf32>
    %412 = vector.extract_strided_slice %409 {offsets = [0, 128], sizes = [2, 64], strides = [1, 1]} : vector<2x256xf32> to vector<2x64xf32>
    %413 = vector.extract_strided_slice %409 {offsets = [0, 192], sizes = [2, 64], strides = [1, 1]} : vector<2x256xf32> to vector<2x64xf32>
    %414 = arith.mulf %411, %364 : vector<2x64xf32>
    %415 = arith.mulf %410, %412 : vector<2x64xf32>
    %416 = arith.addf %414, %415 : vector<2x64xf32>
    %417 = math.tanh %416 : vector<2x64xf32>
    %418 = arith.mulf %413, %417 : vector<2x64xf32>
    %419 = arith.truncf %418 : vector<2x64xf32> to vector<2x64xbf16>
    %cst_92 = arith.constant dense<0.000000e+00> : vector<2x128xf32>
    %420 = tpu.matmul %419, %2, %cst_92 {dimension_numbers = #tpu.dot_dimension_numbers<[1], [0], [0], [1], [0, 0, 1, 1], [], []>} : vector<2x64xbf16>, vector<64x128xbf16>, vector<2x128xf32> -> vector<2x128xf32>
    %421 = arith.addf %420, %396 : vector<2x128xf32>
    %422 = arith.addf %421, %9 : vector<2x128xf32>
    %423 = arith.addf %422, %422 : vector<2x128xf32>
    %424 = arith.select %21, %423, %422 : vector<2x128xi1>, vector<2x128xf32>
    %425 = arith.negf %424 : vector<2x128xf32>
    %426 = math.exp %425 : vector<2x128xf32>
    %cst_93 = arith.constant 1.000000e+00 : f32
    %427 = vector.broadcast %cst_93 : f32 to vector<2x128xf32>
    %428 = arith.addf %427, %426 : vector<2x128xf32>
    %429 = arith.divf %427, %428 : vector<2x128xf32>
    %430 = arith.addf %429, %429 : vector<2x128xf32>
    %cst_94 = arith.constant 1.000000e+00 : f32
    %431 = vector.broadcast %cst_94 : f32 to vector<2x128xf32>
    %432 = arith.subf %430, %431 : vector<2x128xf32>
    %433 = arith.select %21, %432, %429 : vector<2x128xi1>, vector<2x128xf32>
    %434 = vector.extract_strided_slice %433 {offsets = [0, 0], sizes = [2, 32], strides = [1, 1]} : vector<2x128xf32> to vector<2x32xf32>
    %435 = vector.extract_strided_slice %433 {offsets = [0, 32], sizes = [2, 32], strides = [1, 1]} : vector<2x128xf32> to vector<2x32xf32>
    %436 = vector.extract_strided_slice %433 {offsets = [0, 64], sizes = [2, 32], strides = [1, 1]} : vector<2x128xf32> to vector<2x32xf32>
    %437 = vector.extract_strided_slice %433 {offsets = [0, 96], sizes = [2, 32], strides = [1, 1]} : vector<2x128xf32> to vector<2x32xf32>
    %438 = arith.mulf %435, %388 : vector<2x32xf32>
    %439 = arith.mulf %434, %436 : vector<2x32xf32>
    %440 = arith.addf %438, %439 : vector<2x32xf32>
    %441 = math.tanh %440 : vector<2x32xf32>
    %442 = arith.mulf %437, %441 : vector<2x32xf32>
    %c0_95 = arith.constant 0 : index
    %c0_96 = arith.constant 0 : index
    %443 = vector.load %arg8[%c0_95, %c0_96] : memref<1x32xf32, #tpu.memory_space<vmem>>, vector<1x32xf32>
    %444 = vector.broadcast %443 : vector<1x32xf32> to vector<2x32xf32>
    %445 = arith.mulf %442, %444 : vector<2x32xf32>
    %cst_97 = arith.constant dense<0.000000e+00> : vector<2xf32>
    %446 = vector.multi_reduction <add>, %445, %cst_97 [1] : vector<2x32xf32> to vector<2xf32>
    %447 = vector.shape_cast %446 : vector<2xf32> to vector<2x1xf32>
    %c0_98 = arith.constant 0 : index
    %c0_99 = arith.constant 0 : index
    %448 = vector.load %arg9[%c0_98, %c0_99] : memref<1x1xf32, #tpu.memory_space<vmem>>, vector<1x1xf32>
    %449 = vector.broadcast %448 : vector<1x1xf32> to vector<2x1xf32>
    %450 = arith.addf %447, %449 : vector<2x1xf32>
    %c0_100 = arith.constant 0 : index
    %c0_101 = arith.constant 0 : index
    %451 = vector.load %arg10[%c0_100, %c0_101] : memref<2x1xf32, #tpu.memory_space<vmem>>, vector<2x1xf32>
    tpu.vector_store %arg10[%c0_100, %c0_101], %450 {strides = array<i32>} : memref<2x1xf32, #tpu.memory_space<vmem>>, vector<2x1xf32>,
    return
  }
  func.func @transform_0(%arg0: i32) -> (i32, i32, i32) {
    %c0_i32 = arith.constant 0 : i32
    %c0_i32_0 = arith.constant 0 : i32
    %c0_i32_1 = arith.constant 0 : i32
    %c0_i32_2 = arith.constant 0 : i32
    return %c0_i32, %c0_i32_0, %c0_i32_1 : i32, i32, i32
  }
  func.func @transform_1(%arg0: i32) -> (i32, i32) {
    %c0_i32 = arith.constant 0 : i32
    %c0_i32_0 = arith.constant 0 : i32
    %c0_i32_1 = arith.constant 0 : i32
    return %c0_i32, %c0_i32_0 : i32, i32
  }
  func.func @transform_2(%arg0: i32) -> (i32, i32) {
    %c0_i32 = arith.constant 0 : i32
    %c0_i32_0 = arith.constant 0 : i32
    %c0_i32_1 = arith.constant 0 : i32
    return %c0_i32, %c0_i32_0 : i32, i32
  }
  func.func @transform_3(%arg0: i32) -> (i32, i32) {
    %c0_i32 = arith.constant 0 : i32
    %c0_i32_0 = arith.constant 0 : i32
    %c0_i32_1 = arith.constant 0 : i32
    return %c0_i32, %c0_i32_0 : i32, i32
  }
  func.func @transform_4(%arg0: i32) -> (i32, i32) {
    %c0_i32 = arith.constant 0 : i32
    %c0_i32_0 = arith.constant 0 : i32
    %c0_i32_1 = arith.constant 0 : i32
    return %c0_i32, %c0_i32_0 : i32, i32
  }
  func.func @transform_5(%arg0: i32) -> (i32, i32) {
    %c0_i32 = arith.constant 0 : i32
    %c0_i32_0 = arith.constant 0 : i32
    %c0_i32_1 = arith.constant 0 : i32
    return %c0_i32, %c0_i32_0 : i32, i32
  }
  func.func @transform_6(%arg0: i32) -> (i32, i32) {
    %c0_i32 = arith.constant 0 : i32
    %c0_i32_0 = arith.constant 0 : i32
    %c0_i32_1 = arith.constant 0 : i32
    return %c0_i32, %c0_i32_0 : i32, i32
  }
  func.func @transform_7(%arg0: i32) -> (i32, i32) {
    %c0_i32 = arith.constant 0 : i32
    %c0_i32_0 = arith.constant 0 : i32
    %c0_i32_1 = arith.constant 0 : i32
    return %c0_i32, %c0_i32_0 : i32, i32
  }
  func.func @transform_8(%arg0: i32) -> (i32, i32) {
    %c0_i32 = arith.constant 0 : i32
    %c0_i32_0 = arith.constant 0 : i32
    %c0_i32_1 = arith.constant 0 : i32
    return %c0_i32, %c0_i32_0 : i32, i32
  }
  func.func @transform_9(%arg0: i32) -> (i32, i32) {
    %c0_i32 = arith.constant 0 : i32
    %c0_i32_0 = arith.constant 0 : i32
    %c0_i32_1 = arith.constant 0 : i32
    return %c0_i32, %c0_i32_0 : i32, i32
  }
}

</mosaic_0001>

<llo_original>
// kernel: tpu_custom_call.1
$region0: #{tpu_custom_call.1}
  #allocation0 [shape = 'u32[]', space=smem, size = 0x4, offset = 0x4, fixed_abs, tag = 'smem constant byte address 0x4 - core index']
  #allocation1 [shape = 'u32[144,128]{1,0:T(1,128)}', space=vmem, size = 0x12000, scoped, tag = 'internal scratch']
  #allocation2 [shape = 'f32[1,1]{1,0:T(1,128)S(1)}', space=vmem, size = 0x200, scoped, tag = 'scoped memory for tpu_custom_call.1']
  %s0 = inlined_call_operand.vmem [shape: bf16[8,2,4], index: 0, kind: input, shape index: {}]
  %s1 = inlined_call_operand.vmem [shape: bf16[4,256], index: 1, kind: input, shape index: {}]
  %s2 = inlined_call_operand.vmem [shape: f32[1,256], index: 2, kind: input, shape index: {}]
  %s3 = inlined_call_operand.hbm [shape: bf16[64,256], index: 3, kind: input, shape index: {}]
  %s4 = inlined_call_operand.hbm [shape: bf16[64,128], index: 4, kind: input, shape index: {}]
  %s5 = inlined_call_operand.vmem [shape: bf16[32,128], index: 5, kind: input, shape index: {}]
  %s6 = inlined_call_operand.vmem [shape: f32[1,128], index: 6, kind: input, shape index: {}]
  %s7 = inlined_call_operand.vmem [shape: f32[1,32], index: 7, kind: input, shape index: {}]
  %s8 = inlined_call_operand.<no memory space> [shape: f32[1,1], index: 8, kind: input, shape index: {}]
  %s9 = inlined_call_operand.vmem [shape: f32[2,1], index: 9, kind: output, shape index: {}]
  %s10 = sld [smem:[#allocation0]]
  $region54: #{tpu_custom_call.1} parent=0
    _
  %s12 = ssub.s32 1, %s10
  %s13 = scalar_select 0, %s12, %s10
  %v14 = vstv %s8
  %15 = vst [vmem:[#allocation2] sm:$0x1] %v14
  $region1: #{tpu_custom_call.1} parent=0
    #allocation3 [shape = 'u8[32768]{0}', space=vmem, size = 0x8000, scoped, tag = 'input window, operand 3, single buffered']
    #allocation4 [shape = 's32[1]{0}', space=sflag, size = 0x4, scoped, tag = 'scoped memory for tpu_custom_call.1']
    #allocation5 [shape = 'u8[16384]{0}', space=vmem, size = 0x4000, scoped, tag = 'input window, operand 4, single buffered']
    #allocation6 [shape = 's32[1]{0}', space=sflag, size = 0x4, scoped, tag = 'scoped memory for tpu_custom_call.1']
    %16 = vsyncpa [#allocation4], 0
    %17 = vsyncpa [#allocation6], 0
    // Predicated region
    $region2: #{tpu_custom_call.1} parent=1 // pred_check
      _
    $region3: #{tpu_custom_call.1} parent=1 // pred_check_branch
      %19 = sbr.rel (0) target = $region5
    $region4: #{tpu_custom_call.1} parent=1 // pred_region
      _
    $region5: #{tpu_custom_call.1} parent=1 // pred_fallthru
      _
    // Predicated region
    $region6: #{tpu_custom_call.1} parent=1 // pred_check
      _
    $region7: #{tpu_custom_call.1} parent=1 // pred_check_branch
      %21 = sbr.rel (0) target = $region9
    $region8: #{tpu_custom_call.1} parent=1 // pred_region
      _
    $region9: #{tpu_custom_call.1} parent=1 // pred_fallthru
      _
    // Predicated region
    $region10: #{tpu_custom_call.1} parent=1 // pred_check
      _
    $region11: #{tpu_custom_call.1} parent=1 // pred_check_branch
      %23 = sbr.rel (0) target = $region13
    $region12: #{tpu_custom_call.1} parent=1 // pred_region
      _
    $region13: #{tpu_custom_call.1} parent=1 // pred_fallthru
      _
    // Predicated region
    $region14: #{tpu_custom_call.1} parent=1 // pred_check
      _
    $region15: #{tpu_custom_call.1} parent=1 // pred_check_branch
      %25 = sbr.rel (0) target = $region17
    $region16: #{tpu_custom_call.1} parent=1 // pred_region
      %s27 = ssub.s32 1024, 1024
      %28 = vsyncadd [#allocation4], %s27
      %s29 = sshll.u32 [#allocation3], 4
      %s30 = int_to_ptr.vmem [resolvable:$true] %s29
      %35 = dma.hbm_to_vmem [thread:$0]  %s3, 1024, %s30, [#allocation4], 128, 128, 8
    $region17: #{tpu_custom_call.1} parent=1 // pred_fallthru
      _
    // Predicated region
    $region18: #{tpu_custom_call.1} parent=1 // pred_check
      _
    $region19: #{tpu_custom_call.1} parent=1 // pred_check_branch
      %37 = sbr.rel (0) target = $region21
    $region20: #{tpu_custom_call.1} parent=1 // pred_region
      %s39 = ssub.s32 512, 512
      %40 = vsyncadd [#allocation6], %s39
      %s41 = sshll.u32 [#allocation5], 4
      %s42 = int_to_ptr.vmem [resolvable:$true] %s41
      %47 = dma.hbm_to_vmem [thread:$0]  %s4, 512, %s42, [#allocation6], 64, 64, 4
    $region21: #{tpu_custom_call.1} parent=1 // pred_fallthru
      _
    // Predicated region
    $region22: #{tpu_custom_call.1} parent=1 // pred_check
      _
    $region23: #{tpu_custom_call.1} parent=1 // pred_check_branch
      %49 = sbr.rel (0) target = $region25
    $region24: #{tpu_custom_call.1} parent=1 // pred_region
      _
    $region25: #{tpu_custom_call.1} parent=1 // pred_fallthru
      _
    // Predicated region
    $region26: #{tpu_custom_call.1} parent=1 // pred_check
      _
    $region27: #{tpu_custom_call.1} parent=1 // pred_check_branch
      %51 = sbr.rel (0) target = $region29
    $region28: #{tpu_custom_call.1} parent=1 // pred_region
      _
    $region29: #{tpu_custom_call.1} parent=1 // pred_fallthru
      _
    // Predicated region
    $region30: #{tpu_custom_call.1} parent=1 // pred_check
      _
    $region31: #{tpu_custom_call.1} parent=1 // pred_check_branch
      %53 = sbr.rel (0) target = $region33
    $region32: #{tpu_custom_call.1} parent=1 // pred_region
      _
    $region33: #{tpu_custom_call.1} parent=1 // pred_fallthru
      _
    // Predicated region
    $region34: #{tpu_custom_call.1} parent=1 // pred_check
      _
    $region35: #{tpu_custom_call.1} parent=1 // pred_check_branch
      %55 = sbr.rel (0) target = $region37
    $region36: #{tpu_custom_call.1} parent=1 // pred_region
      _
    $region37: #{tpu_custom_call.1} parent=1 // pred_fallthru
      _
    // Predicated region
    $region38: #{tpu_custom_call.1} parent=1 // pred_check
      _
    $region39: #{tpu_custom_call.1} parent=1 // pred_check_branch
      %57 = sbr.rel (0) target = $region41
    $region40: #{tpu_custom_call.1} parent=1 // pred_region
      %58 = dma.done [#allocation4], 1024
    $region41: #{tpu_custom_call.1} parent=1 // pred_fallthru
      _
    // Predicated region
    $region42: #{tpu_custom_call.1} parent=1 // pred_check
      _
    $region43: #{tpu_custom_call.1} parent=1 // pred_check_branch
      %60 = sbr.rel (0) target = $region45
    $region44: #{tpu_custom_call.1} parent=1 // pred_region
      %61 = dma.done [#allocation6], 512
    $region45: #{tpu_custom_call.1} parent=1 // pred_fallthru
      _
    %v63 = vld [vmem:[%s1] sm:$0xf]
    %v64 = vld [vmem:[#allocation3] sm:$0xff]
    %v65 = vld [vmem:[#allocation3 + $0x8] sm:$0xff]
    %v66 = vld [vmem:[#allocation3 + $0x10] sm:$0xff]
    %v67 = vld [vmem:[#allocation3 + $0x18] sm:$0xff]
    %v68 = vld [vmem:[#allocation3 + $0x20] sm:$0xff]
    %v69 = vld [vmem:[#allocation3 + $0x28] sm:$0xff]
    %v70 = vld [vmem:[#allocation3 + $0x30] sm:$0xff]
    %v71 = vld [vmem:[#allocation3 + $0x38] sm:$0xff]
    %v72 = vld [vmem:[#allocation5] sm:$0xf]
    %v73 = vld [vmem:[#allocation5 + $0x4] sm:$0xf]
    %v74 = vld [vmem:[#allocation5 + $0x8] sm:$0xf]
    %v75 = vld [vmem:[#allocation5 + $0xc] sm:$0xf]
    %v76 = vld [vmem:[#allocation5 + $0x10] sm:$0xf]
    %v77 = vld [vmem:[#allocation5 + $0x14] sm:$0xf]
    %v78 = vld [vmem:[#allocation5 + $0x18] sm:$0xf]
    %v79 = vld [vmem:[#allocation5 + $0x1c] sm:$0xf]
    %v80 = vld [vmem:[%s5] sm:$0xf]
    %v81 = vld [vmem:[%s5 + $0x4] sm:$0xf]
    %v82 = vld [vmem:[%s5 + $0x8] sm:$0xf]
    %v83 = vld [vmem:[%s5 + $0xc] sm:$0xf]
    %v84 = vld [vmem:[%s2] sm:$0x3]
    %v86 = vlaneseq
    %v87 = vshrl.u32 %v86, 7
    %v88 = vsub.s32 0, %v87
    %v89 = vrot.slane %v84, %v88
    %v90 = vlaneseq
    %v91 = vshrl.u32 %v90, 7
    %v92 = vsub.s32 1, %v91
    %v93 = vrot.slane %v84, %v92
    %v96 = vld [vmem:[%s6] sm:$0x1]
    %v98 = vlaneseq
    %v99 = vshrl.u32 %v98, 7
    %v100 = vsub.s32 0, %v99
    %v101 = vrot.slane %v96, %v100
    %v103 = vlaneseq
    %v104 = vand.u32 %v103, 127
    %v105 = vadd.s32 %v104, 128
    %vm106 = vcmp.ge.s32.totalorder %v104, 128
    %vm107 = vcmp.ge.s32.totalorder %v105, 128
    %vm108 = vcmp.lt.s32.totalorder %v104, 192
    %vm109 = vcmp.lt.s32.totalorder %v105, 192
    %vm110 = vmand %vm106, %vm108
    %vm111 = vmand %vm107, %vm109
    %vm112 = vcmp.ge.s32.totalorder %v104, 64
    %vm113 = vcmp.lt.s32.totalorder %v104, 96
    %vm114 = vmand %vm112, %vm113
    %v115 = vld [vmem:[%s0] sm:$0x1]
    %v118 = vunpack.c.l.s4 1983009808
    %v119 = vunpack.c.0.s8 %v118
    %v120 = vlaneseq
    %v121 = vshrl.u32 %v120, 7
    %v122 = vsub.s32 %v119, %v121
    %v123 = vrot.slane %v63, %v122
    %v124 = vcombine.high %v123, %v123
    %vm125 = vcmask 31744
    %v127 = vsel %vm125, %v115, 0
    %vm129 = vcmask 1041408
    %v131 = vsel %vm129, %v123, 0
    %v134 = vsel %vm129, %v124, 0
    %136 = vmatprep.subr.bf16.mxu0 0
    %137 = vmatpush1.bf16.msra.mxu0 0
    %138 = vmatprep.subr.bf16.mxu0 0
    %139 = vmatpush1.bf16.msra.mxu0 0
    %140 = vmatprep.subr.bf16.mxu0 0
    %141 = vmatpush1.bf16.msra.mxu0 0
    %142 = vmatprep.subr.bf16.mxu0 0
    %143 = vmatpush1.bf16.msra.mxu0 0
    %144 = vmatprep.subr.bf16.mxu0 0
    %145 = vmatpush1.bf16.msra.mxu0 0
    %146 = vmatprep.subr.bf16.mxu0 0
    %147 = vmatpush1.bf16.msra.mxu0 0
    %148 = vmatprep.subr.bf16.mxu0 0
    %149 = vmatpush1.bf16.msra.mxu0 0
    %150 = vmatprep.subr.bf16.mxu0 %v134
    %151 = vmatpush1.bf16.msra.mxu0 %v131
    %152 = vmatprep.subr.bf16.mxu0 0
    %153 = vmatpush2.bf16.msra.mxu0 0
    %154 = vmatprep.subr.bf16.mxu0 0
    %155 = vmatpush2.bf16.msra.mxu0 0
    %156 = vmatprep.subr.bf16.mxu0 0
    %157 = vmatpush2.bf16.msra.mxu0 0
    %158 = vmatprep.subr.bf16.mxu0 0
    %159 = vmatpush2.bf16.msra.mxu0 0
    %160 = vmatprep.subr.bf16.mxu0 0
    %161 = vmatpush2.bf16.msra.mxu0 0
    %162 = vmatprep.subr.bf16.mxu0 0
    %163 = vmatpush2.bf16.msra.mxu0 0
    %164 = vmatprep.subr.bf16.mxu0 0
    %165 = vmatpush2.bf16.msra.mxu0 0
    %166 = vmatprep.subr.bf16.mxu0 0
    %167 = vmatpush2.bf16.msra.mxu0 0
    %168 = vmatprep.mubr.bf16.mxu0 0
    %169 = vmatmul.mubr.bf16.gmra.mxu0 %v127
    %v170 = vpop.f32.mrf.mxu0
    %v171 = vadd.f32 %v89, %v170
    %v172 = vpop.f32.mrf.mxu0
    %v173 = vadd.f32 %v93, %v172
    %v174 = vpop.f32.mrf.mxu0
    %v175 = vpop.f32.mrf.mxu0
    %176 = vdwg.mxu0
    %v181 = vunpack.c.l.b16 %v80
    %v182 = vunpack.c.l.b16 %v81
    %v183 = vunpack.c.l.b16 %v82
    %v184 = vunpack.c.l.b16 %v83
    %v185 = vpack.c.b16 %v182, %v181
    %v186 = vpack.c.b16 %v184, %v183
    %vm189 = vcmask 261120
    %v191 = vsel %vm189, 0, 0
    %193 = vmatprep.subr.bf16.mxu0 0
    %194 = vmatpush1.bf16.msra.mxu0 0
    %195 = vmatprep.subr.bf16.mxu0 0
    %196 = vmatpush1.bf16.msra.mxu0 0
    %197 = vmatprep.subr.bf16.mxu0 0
    %198 = vmatpush1.bf16.msra.mxu0 0
    %199 = vmatprep.subr.bf16.mxu0 0
    %200 = vmatpush1.bf16.msra.mxu0 0
    %201 = vmatprep.subr.bf16.mxu0 0
    %202 = vmatpush1.bf16.msra.mxu0 0
    %203 = vmatprep.subr.bf16.mxu0 0
    %204 = vmatpush1.bf16.msra.mxu0 0
    %205 = vmatprep.subr.bf16.mxu0 0
    %206 = vmatpush1.bf16.msra.mxu0 %v186
    %207 = vmatprep.subr.bf16.mxu0 0
    %208 = vmatpush1.bf16.msra.mxu0 %v185
    %209 = vmatprep.subr.bf16.mxu0 0
    %210 = vmatpush2.bf16.msra.mxu0 0
    %211 = vmatprep.subr.bf16.mxu0 0
    %212 = vmatpush2.bf16.msra.mxu0 0
    %213 = vmatprep.subr.bf16.mxu0 0
    %214 = vmatpush2.bf16.msra.mxu0 0
    %215 = vmatprep.subr.bf16.mxu0 0
    %216 = vmatpush2.bf16.msra.mxu0 0
    %217 = vmatprep.subr.bf16.mxu0 0
    %218 = vmatpush2.bf16.msra.mxu0 0
    %219 = vmatprep.subr.bf16.mxu0 0
    %220 = vmatpush2.bf16.msra.mxu0 0
    %221 = vmatprep.subr.bf16.mxu0 0
    %222 = vmatpush2.bf16.msra.mxu0 0
    %223 = vmatprep.subr.bf16.mxu0 0
    %224 = vmatpush2.bf16.msra.mxu0 0
    %225 = vmatprep.mubr.bf16.mxu0 0
    %226 = vmatmul.mubr.bf16.gmra.mxu0 %v191
    %v227 = vpop.f32.mrf.mxu0
    %v228 = vadd.f32 0.0, %v227
    %v229 = vpop.f32.mrf.mxu0
    %v230 = vpop.f32.mrf.mxu0
    %v231 = vpop.f32.mrf.mxu0
    %232 = vdwg.mxu0
    %v241 = vunpack.c.l.b16 %v64
    %v242 = vunpack.c.h.b16 %v64
    %v243 = vunpack.c.l.b16 %v65
    %v244 = vunpack.c.h.b16 %v65
    %v245 = vunpack.c.l.b16 %v66
    %v246 = vunpack.c.h.b16 %v66
    %v247 = vunpack.c.l.b16 %v67
    %v248 = vunpack.c.h.b16 %v67
    %v249 = vunpack.c.l.b16 %v68
    %v250 = vunpack.c.h.b16 %v68
    %v251 = vunpack.c.l.b16 %v69
    %v252 = vunpack.c.h.b16 %v69
    %v253 = vunpack.c.l.b16 %v70
    %v254 = vunpack.c.h.b16 %v70
    %v255 = vunpack.c.l.b16 %v71
    %v256 = vunpack.c.h.b16 %v71
    %v257 = vpack.c.b16 %v243, %v241
    %v258 = vpack.c.b16 %v244, %v242
    %v259 = vpack.c.b16 %v247, %v245
    %v260 = vpack.c.b16 %v248, %v246
    %v261 = vpack.c.b16 %v251, %v249
    %v262 = vpack.c.b16 %v252, %v250
    %v263 = vpack.c.b16 %v255, %v253
    %v264 = vpack.c.b16 %v256, %v254
    %vm273 = vcmask 523264
    %v274 = vsel %vm273, 0, 0
    %276 = vmatprep.subr.bf16.mxu0 0
    %277 = vmatpush1.bf16.msra.mxu0 0
    %278 = vmatprep.subr.bf16.mxu0 0
    %279 = vmatpush1.bf16.msra.mxu0 0
    %280 = vmatprep.subr.bf16.mxu0 0
    %281 = vmatpush1.bf16.msra.mxu0 0
    %282 = vmatprep.subr.bf16.mxu0 0
    %283 = vmatpush1.bf16.msra.mxu0 0
    %284 = vmatprep.subr.bf16.mxu0 %v264
    %285 = vmatpush1.bf16.msra.mxu0 %v263
    %286 = vmatprep.subr.bf16.mxu0 %v262
    %287 = vmatpush1.bf16.msra.mxu0 %v261
    %288 = vmatprep.subr.bf16.mxu0 %v260
    %289 = vmatpush1.bf16.msra.mxu0 %v259
    %290 = vmatprep.subr.bf16.mxu0 %v258
    %291 = vmatpush1.bf16.msra.mxu0 %v257
    %292 = vmatprep.subr.bf16.mxu0 0
    %293 = vmatpush2.bf16.msra.mxu0 0
    %294 = vmatprep.subr.bf16.mxu0 0
    %295 = vmatpush2.bf16.msra.mxu0 0
    %296 = vmatprep.subr.bf16.mxu0 0
    %297 = vmatpush2.bf16.msra.mxu0 0
    %298 = vmatprep.subr.bf16.mxu0 0
    %299 = vmatpush2.bf16.msra.mxu0 0
    %300 = vmatprep.subr.bf16.mxu0 0
    %301 = vmatpush2.bf16.msra.mxu0 0
    %302 = vmatprep.subr.bf16.mxu0 0
    %303 = vmatpush2.bf16.msra.mxu0 0
    %304 = vmatprep.subr.bf16.mxu0 0
    %305 = vmatpush2.bf16.msra.mxu0 0
    %306 = vmatprep.subr.bf16.mxu0 0
    %307 = vmatpush2.bf16.msra.mxu0 0
    %308 = vmatprep.mubr.bf16.mxu0 0
    %309 = vmatmul.mubr.bf16.gmra.mxu0 %v274
    %v310 = vpop.f32.mrf.mxu0
    %v311 = vadd.f32 0.0, %v310
    %v312 = vpop.f32.mrf.mxu0
    %v313 = vadd.f32 0.0, %v312
    %v314 = vpop.f32.mrf.mxu0
    %v315 = vpop.f32.mrf.mxu0
    %316 = vdwg.mxu0
    %v317 = vadd.f32 %v171, %v311
    %v318 = vadd.f32 %v173, %v313
    %v319 = vadd.f32 %v317, %v317
    %v320 = vadd.f32 %v318, %v318
    %v321 = vsel %vm110, %v319, %v317
    %v322 = vsel %vm111, %v320, %v318
    %v323 = vxor.u32 %v321, 2147483648
    %v324 = vxor.u32 %v322, 2147483648
    %v325 = vmul.f32 %v323, 1.442695
    %v326 = vpow.pop %v325
    %v327 = vmul.f32 %v324, 1.442695
    %v328 = vpow.pop %v327
    %v329 = vadd.f32 %v326, 1.0
    %v330 = vadd.f32 %v328, 1.0
    %v331 = vrcp.pop %v329
    %v332 = vmul.f32 1.0, %v331
    %v333 = vrcp.pop %v330
    %v334 = vmul.f32 1.0, %v333
    %v335 = vadd.f32 %v332, %v332
    %v336 = vadd.f32 %v334, %v334
    %v337 = vsub.f32 %v335, 1.0
    %v338 = vsub.f32 %v336, 1.0
    %v339 = vsel %vm110, %v337, %v332
    %v340 = vsel %vm111, %v338, %v334
    %v341 = vmul.f32 %v339, 0.0
    %v342 = vmul.f32 %v339, %v340
    %344 = vrot.lane.b32.xlu0 %v342, 64
    %v345 = vpop.permute.xlu0 %344
    %v347 = vadd.f32 %v341, %v345
    %v348 = vtanh.pop %v347
    %v349 = vmul.f32 %v340, %v348
    %v350 = vpack.c.bf16 %v349, %v349
    %352 = vrot.lane.b32.xlu0 %v350, 64
    %v353 = vpop.permute.xlu0 %352
    %v362 = vunpack.c.l.b16 %v72
    %v363 = vunpack.c.l.b16 %v73
    %v364 = vunpack.c.l.b16 %v74
    %v365 = vunpack.c.l.b16 %v75
    %v366 = vunpack.c.l.b16 %v76
    %v367 = vunpack.c.l.b16 %v77
    %v368 = vunpack.c.l.b16 %v78
    %v369 = vunpack.c.l.b16 %v79
    %v370 = vpack.c.b16 %v363, %v362
    %v371 = vpack.c.b16 %v365, %v364
    %v372 = vpack.c.b16 %v367, %v366
    %v373 = vpack.c.b16 %v369, %v368
    %v379 = vsel %vm273, %v353, 0
    %381 = vmatprep.subr.bf16.mxu0 0
    %382 = vmatpush1.bf16.msra.mxu0 0
    %383 = vmatprep.subr.bf16.mxu0 0
    %384 = vmatpush1.bf16.msra.mxu0 0
    %385 = vmatprep.subr.bf16.mxu0 0
    %386 = vmatpush1.bf16.msra.mxu0 0
    %387 = vmatprep.subr.bf16.mxu0 0
    %388 = vmatpush1.bf16.msra.mxu0 0
    %389 = vmatprep.subr.bf16.mxu0 0
    %390 = vmatpush1.bf16.msra.mxu0 %v373
    %391 = vmatprep.subr.bf16.mxu0 0
    %392 = vmatpush1.bf16.msra.mxu0 %v372
    %393 = vmatprep.subr.bf16.mxu0 0
    %394 = vmatpush1.bf16.msra.mxu0 %v371
    %395 = vmatprep.subr.bf16.mxu0 0
    %396 = vmatpush1.bf16.msra.mxu0 %v370
    %397 = vmatprep.subr.bf16.mxu0 0
    %398 = vmatpush2.bf16.msra.mxu0 0
    %399 = vmatprep.subr.bf16.mxu0 0
    %400 = vmatpush2.bf16.msra.mxu0 0
    %401 = vmatprep.subr.bf16.mxu0 0
    %402 = vmatpush2.bf16.msra.mxu0 0
    %403 = vmatprep.subr.bf16.mxu0 0
    %404 = vmatpush2.bf16.msra.mxu0 0
    %405 = vmatprep.subr.bf16.mxu0 0
    %406 = vmatpush2.bf16.msra.mxu0 0
    %407 = vmatprep.subr.bf16.mxu0 0
    %408 = vmatpush2.bf16.msra.mxu0 0
    %409 = vmatprep.subr.bf16.mxu0 0
    %410 = vmatpush2.bf16.msra.mxu0 0
    %411 = vmatprep.subr.bf16.mxu0 0
    %412 = vmatpush2.bf16.msra.mxu0 0
    %413 = vmatprep.mubr.bf16.mxu0 0
    %414 = vmatmul.mubr.bf16.gmra.mxu0 %v379
    %v415 = vpop.f32.mrf.mxu0
    %v416 = vadd.f32 %v228, %v415
    %v417 = vpop.f32.mrf.mxu0
    %v418 = vpop.f32.mrf.mxu0
    %v419 = vpop.f32.mrf.mxu0
    %420 = vdwg.mxu0
    %v421 = vadd.f32 %v416, %v101
    %v422 = vadd.f32 %v421, %v421
    %v423 = vsel %vm114, %v422, %v421
    %v424 = vxor.u32 %v423, 2147483648
    %v425 = vmul.f32 %v424, 1.442695
    %v426 = vpow.pop %v425
    %v427 = vadd.f32 %v426, 1.0
    %v428 = vrcp.pop %v427
    %v429 = vmul.f32 1.0, %v428
    %v430 = vadd.f32 %v429, %v429
    %v431 = vsub.f32 %v430, 1.0
    %v432 = vsel %vm114, %v431, %v429
    %v433 = vmul.f32 %v432, 0.0
    %435 = vrot.lane.b32.xlu0 %v432, 64
    %v436 = vpop.permute.xlu0 %435
    %v438 = vmul.f32 %v432, %v436
    %440 = vrot.lane.b32.xlu0 %v438, 32
    %v441 = vpop.permute.xlu0 %440
    %v443 = vadd.f32 %v433, %v441
    %v444 = vtanh.pop %v443
    %446 = vrot.lane.b32.xlu0 %v444, 64
    %v447 = vpop.permute.xlu0 %446
    %v449 = vmul.f32 %v432, %v447
    %v450 = vpack.c.bf16 %v449, %v449
    %s451 = scalar_lea.vmem %s0, 1
    %v452 = vld [vmem:[%s451] sm:$0x1]
    %v454 = vsel %vm125, %v452, 0
    %456 = vmatprep.subr.bf16.mxu0 0
    %457 = vmatpush1.bf16.msra.mxu0 0
    %458 = vmatprep.subr.bf16.mxu0 0
    %459 = vmatpush1.bf16.msra.mxu0 0
    %460 = vmatprep.subr.bf16.mxu0 0
    %461 = vmatpush1.bf16.msra.mxu0 0
    %462 = vmatprep.subr.bf16.mxu0 0
    %463 = vmatpush1.bf16.msra.mxu0 0
    %464 = vmatprep.subr.bf16.mxu0 0
    %465 = vmatpush1.bf16.msra.mxu0 0
    %466 = vmatprep.subr.bf16.mxu0 0
    %467 = vmatpush1.bf16.msra.mxu0 0
    %468 = vmatprep.subr.bf16.mxu0 0
    %469 = vmatpush1.bf16.msra.mxu0 0
    %470 = vmatprep.subr.bf16.mxu0 %v134
    %471 = vmatpush1.bf16.msra.mxu0 %v131
    %472 = vmatprep.subr.bf16.mxu0 0
    %473 = vmatpush2.bf16.msra.mxu0 0
    %474 = vmatprep.subr.bf16.mxu0 0
    %475 = vmatpush2.bf16.msra.mxu0 0
    %476 = vmatprep.subr.bf16.mxu0 0
    %477 = vmatpush2.bf16.msra.mxu0 0
    %478 = vmatprep.subr.bf16.mxu0 0
    %479 = vmatpush2.bf16.msra.mxu0 0
    %480 = vmatprep.subr.bf16.mxu0 0
    %481 = vmatpush2.bf16.msra.mxu0 0
    %482 = vmatprep.subr.bf16.mxu0 0
    %483 = vmatpush2.bf16.msra.mxu0 0
    %484 = vmatprep.subr.bf16.mxu0 0
    %485 = vmatpush2.bf16.msra.mxu0 0
    %486 = vmatprep.subr.bf16.mxu0 0
    %487 = vmatpush2.bf16.msra.mxu0 0
    %488 = vmatprep.mubr.bf16.mxu0 0
    %489 = vmatmul.mubr.bf16.gmra.mxu0 %v454
    %v490 = vpop.f32.mrf.mxu0
    %v491 = vadd.f32 %v89, %v490
    %v492 = vpop.f32.mrf.mxu0
    %v493 = vadd.f32 %v93, %v492
    %v494 = vpop.f32.mrf.mxu0
    %v495 = vpop.f32.mrf.mxu0
    %496 = vdwg.mxu0
    %498 = vrot.lane.b32.xlu0 %v450, 32
    %v499 = vpop.permute.xlu0 %498
    %v501 = vsel %vm189, %v499, 0
    %503 = vmatprep.subr.bf16.mxu0 0
    %504 = vmatpush1.bf16.msra.mxu0 0
    %505 = vmatprep.subr.bf16.mxu0 0
    %506 = vmatpush1.bf16.msra.mxu0 0
    %507 = vmatprep.subr.bf16.mxu0 0
    %508 = vmatpush1.bf16.msra.mxu0 0
    %509 = vmatprep.subr.bf16.mxu0 0
    %510 = vmatpush1.bf16.msra.mxu0 0
    %511 = vmatprep.subr.bf16.mxu0 0
    %512 = vmatpush1.bf16.msra.mxu0 0
    %513 = vmatprep.subr.bf16.mxu0 0
    %514 = vmatpush1.bf16.msra.mxu0 0
    %515 = vmatprep.subr.bf16.mxu0 0
    %516 = vmatpush1.bf16.msra.mxu0 %v186
    %517 = vmatprep.subr.bf16.mxu0 0
    %518 = vmatpush1.bf16.msra.mxu0 %v185
    %519 = vmatprep.subr.bf16.mxu0 0
    %520 = vmatpush2.bf16.msra.mxu0 0
    %521 = vmatprep.subr.bf16.mxu0 0
    %522 = vmatpush2.bf16.msra.mxu0 0
    %523 = vmatprep.subr.bf16.mxu0 0
    %524 = vmatpush2.bf16.msra.mxu0 0
    %525 = vmatprep.subr.bf16.mxu0 0
    %526 = vmatpush2.bf16.msra.mxu0 0
    %527 = vmatprep.subr.bf16.mxu0 0
    %528 = vmatpush2.bf16.msra.mxu0 0
    %529 = vmatprep.subr.bf16.mxu0 0
    %530 = vmatpush2.bf16.msra.mxu0 0
    %531 = vmatprep.subr.bf16.mxu0 0
    %532 = vmatpush2.bf16.msra.mxu0 0
    %533 = vmatprep.subr.bf16.mxu0 0
    %534 = vmatpush2.bf16.msra.mxu0 0
    %535 = vmatprep.mubr.bf16.mxu0 0
    %536 = vmatmul.mubr.bf16.gmra.mxu0 %v501
    %v537 = vpop.f32.mrf.mxu0
    %v538 = vadd.f32 0.0, %v537
    %v539 = vpop.f32.mrf.mxu0
    %v540 = vpop.f32.mrf.mxu0
    %v541 = vpop.f32.mrf.mxu0
    %542 = vdwg.mxu0
    %543 = vmatprep.subr.bf16.mxu0 0
    %544 = vmatpush1.bf16.msra.mxu0 0
    %545 = vmatprep.subr.bf16.mxu0 0
    %546 = vmatpush1.bf16.msra.mxu0 0
    %547 = vmatprep.subr.bf16.mxu0 0
    %548 = vmatpush1.bf16.msra.mxu0 0
    %549 = vmatprep.subr.bf16.mxu0 0
    %550 = vmatpush1.bf16.msra.mxu0 0
    %551 = vmatprep.subr.bf16.mxu0 %v264
    %552 = vmatpush1.bf16.msra.mxu0 %v263
    %553 = vmatprep.subr.bf16.mxu0 %v262
    %554 = vmatpush1.bf16.msra.mxu0 %v261
    %555 = vmatprep.subr.bf16.mxu0 %v260
    %556 = vmatpush1.bf16.msra.mxu0 %v259
    %557 = vmatprep.subr.bf16.mxu0 %v258
    %558 = vmatpush1.bf16.msra.mxu0 %v257
    %559 = vmatprep.subr.bf16.mxu0 0
    %560 = vmatpush2.bf16.msra.mxu0 0
    %561 = vmatprep.subr.bf16.mxu0 0
    %562 = vmatpush2.bf16.msra.mxu0 0
    %563 = vmatprep.subr.bf16.mxu0 0
    %564 = vmatpush2.bf16.msra.mxu0 0
    %565 = vmatprep.subr.bf16.mxu0 0
    %566 = vmatpush2.bf16.msra.mxu0 0
    %567 = vmatprep.subr.bf16.mxu0 0
    %568 = vmatpush2.bf16.msra.mxu0 0
    %569 = vmatprep.subr.bf16.mxu0 0
    %570 = vmatpush2.bf16.msra.mxu0 0
    %571 = vmatprep.subr.bf16.mxu0 0
    %572 = vmatpush2.bf16.msra.mxu0 0
    %573 = vmatprep.subr.bf16.mxu0 0
    %574 = vmatpush2.bf16.msra.mxu0 0
    %575 = vmatprep.mubr.bf16.mxu0 0
    %576 = vmatmul.mubr.bf16.gmra.mxu0 %v379
    %v577 = vpop.f32.mrf.mxu0
    %v578 = vadd.f32 0.0, %v577
    %v579 = vpop.f32.mrf.mxu0
    %v580 = vadd.f32 0.0, %v579
    %v581 = vpop.f32.mrf.mxu0
    %v582 = vpop.f32.mrf.mxu0
    %583 = vdwg.mxu0
    %v584 = vadd.f32 %v491, %v578
    %v585 = vadd.f32 %v493, %v580
    %v586 = vadd.f32 %v584, %v584
    %v587 = vadd.f32 %v585, %v585
    %v588 = vsel %vm110, %v586, %v584
    %v589 = vsel %vm111, %v587, %v585
    %v590 = vxor.u32 %v588, 2147483648
    %v591 = vxor.u32 %v589, 2147483648
    %v592 = vmul.f32 %v590, 1.442695
    %v593 = vpow.pop %v592
    %v594 = vmul.f32 %v591, 1.442695
    %v595 = vpow.pop %v594
    %v596 = vadd.f32 %v593, 1.0
    %v597 = vadd.f32 %v595, 1.0
    %v598 = vrcp.pop %v596
    %v599 = vmul.f32 1.0, %v598
    %v600 = vrcp.pop %v597
    %v601 = vmul.f32 1.0, %v600
    %v602 = vadd.f32 %v599, %v599
    %v603 = vadd.f32 %v601, %v601
    %v604 = vsub.f32 %v602, 1.0
    %v605 = vsub.f32 %v603, 1.0
    %v606 = vsel %vm110, %v604, %v599
    %v607 = vsel %vm111, %v605, %v601
    %v608 = vmul.f32 %v606, %v347
    %v609 = vmul.f32 %v606, %v607
    %611 = vrot.lane.b32.xlu0 %v609, 64
    %v612 = vpop.permute.xlu0 %611
    %v614 = vadd.f32 %v608, %v612
    %v615 = vtanh.pop %v614
    %v616 = vmul.f32 %v607, %v615
    %v617 = vpack.c.bf16 %v616, %v616
    %619 = vrot.lane.b32.xlu0 %v617, 64
    %v620 = vpop.permute.xlu0 %619
    %v622 = vsel %vm273, %v620, 0
    %624 = vmatprep.subr.bf16.mxu0 0
    %625 = vmatpush1.bf16.msra.mxu0 0
    %626 = vmatprep.subr.bf16.mxu0 0
    %627 = vmatpush1.bf16.msra.mxu0 0
    %628 = vmatprep.subr.bf16.mxu0 0
    %629 = vmatpush1.bf16.msra.mxu0 0
    %630 = vmatprep.subr.bf16.mxu0 0
    %631 = vmatpush1.bf16.msra.mxu0 0
    %632 = vmatprep.subr.bf16.mxu0 0
    %633 = vmatpush1.bf16.msra.mxu0 %v373
    %634 = vmatprep.subr.bf16.mxu0 0
    %635 = vmatpush1.bf16.msra.mxu0 %v372
    %636 = vmatprep.subr.bf16.mxu0 0
    %637 = vmatpush1.bf16.msra.mxu0 %v371
    %638 = vmatprep.subr.bf16.mxu0 0
    %639 = vmatpush1.bf16.msra.mxu0 %v370
    %640 = vmatprep.subr.bf16.mxu0 0
    %641 = vmatpush2.bf16.msra.mxu0 0
    %642 = vmatprep.subr.bf16.mxu0 0
    %643 = vmatpush2.bf16.msra.mxu0 0
    %644 = vmatprep.subr.bf16.mxu0 0
    %645 = vmatpush2.bf16.msra.mxu0 0
    %646 = vmatprep.subr.bf16.mxu0 0
    %647 = vmatpush2.bf16.msra.mxu0 0
    %648 = vmatprep.subr.bf16.mxu0 0
    %649 = vmatpush2.bf16.msra.mxu0 0
    %650 = vmatprep.subr.bf16.mxu0 0
    %651 = vmatpush2.bf16.msra.mxu0 0
    %652 = vmatprep.subr.bf16.mxu0 0
    %653 = vmatpush2.bf16.msra.mxu0 0
    %654 = vmatprep.subr.bf16.mxu0 0
    %655 = vmatpush2.bf16.msra.mxu0 0
    %656 = vmatprep.mubr.bf16.mxu0 0
    %657 = vmatmul.mubr.bf16.gmra.mxu0 %v622
    %v658 = vpop.f32.mrf.mxu0
    %v659 = vadd.f32 %v538, %v658
    %v660 = vpop.f32.mrf.mxu0
    %v661 = vpop.f32.mrf.mxu0
    %v662 = vpop.f32.mrf.mxu0
    %663 = vdwg.mxu0
    %v664 = vadd.f32 %v659, %v101
    %v665 = vadd.f32 %v664, %v664
    %v666 = vsel %vm114, %v665, %v664
    %v667 = vxor.u32 %v666, 2147483648
    %v668 = vmul.f32 %v667, 1.442695
    %v669 = vpow.pop %v668
    %v670 = vadd.f32 %v669, 1.0
    %v671 = vrcp.pop %v670
    %v672 = vmul.f32 1.0, %v671
    %v673 = vadd.f32 %v672, %v672
    %v674 = vsub.f32 %v673, 1.0
    %v675 = vsel %vm114, %v674, %v672
    %v676 = vmul.f32 %v675, %v443
    %678 = vrot.lane.b32.xlu0 %v675, 64
    %v679 = vpop.permute.xlu0 %678
    %v681 = vmul.f32 %v675, %v679
    %683 = vrot.lane.b32.xlu0 %v681, 32
    %v684 = vpop.permute.xlu0 %683
    %v686 = vadd.f32 %v676, %v684
    %v687 = vtanh.pop %v686
    %689 = vrot.lane.b32.xlu0 %v687, 64
    %v690 = vpop.permute.xlu0 %689
    %v692 = vmul.f32 %v675, %v690
    %v693 = vpack.c.bf16 %v692, %v692
    %s694 = scalar_lea.vmem %s0, 2
    %v695 = vld [vmem:[%s694] sm:$0x1]
    %v697 = vsel %vm125, %v695, 0
    %699 = vmatprep.subr.bf16.mxu0 0
    %700 = vmatpush1.bf16.msra.mxu0 0
    %701 = vmatprep.subr.bf16.mxu0 0
    %702 = vmatpush1.bf16.msra.mxu0 0
    %703 = vmatprep.subr.bf16.mxu0 0
    %704 = vmatpush1.bf16.msra.mxu0 0
    %705 = vmatprep.subr.bf16.mxu0 0
    %706 = vmatpush1.bf16.msra.mxu0 0
    %707 = vmatprep.subr.bf16.mxu0 0
    %708 = vmatpush1.bf16.msra.mxu0 0
    %709 = vmatprep.subr.bf16.mxu0 0
    %710 = vmatpush1.bf16.msra.mxu0 0
    %711 = vmatprep.subr.bf16.mxu0 0
    %712 = vmatpush1.bf16.msra.mxu0 0
    %713 = vmatprep.subr.bf16.mxu0 %v134
    %714 = vmatpush1.bf16.msra.mxu0 %v131
    %715 = vmatprep.subr.bf16.mxu0 0
    %716 = vmatpush2.bf16.msra.mxu0 0
    %717 = vmatprep.subr.bf16.mxu0 0
    %718 = vmatpush2.bf16.msra.mxu0 0
    %719 = vmatprep.subr.bf16.mxu0 0
    %720 = vmatpush2.bf16.msra.mxu0 0
    %721 = vmatprep.subr.bf16.mxu0 0
    %722 = vmatpush2.bf16.msra.mxu0 0
    %723 = vmatprep.subr.bf16.mxu0 0
    %724 = vmatpush2.bf16.msra.mxu0 0
    %725 = vmatprep.subr.bf16.mxu0 0
    %726 = vmatpush2.bf16.msra.mxu0 0
    %727 = vmatprep.subr.bf16.mxu0 0
    %728 = vmatpush2.bf16.msra.mxu0 0
    %729 = vmatprep.subr.bf16.mxu0 0
    %730 = vmatpush2.bf16.msra.mxu0 0
    %731 = vmatprep.mubr.bf16.mxu0 0
    %732 = vmatmul.mubr.bf16.gmra.mxu0 %v697
    %v733 = vpop.f32.mrf.mxu0
    %v734 = vadd.f32 %v89, %v733
    %v735 = vpop.f32.mrf.mxu0
    %v736 = vadd.f32 %v93, %v735
    %v737 = vpop.f32.mrf.mxu0
    %v738 = vpop.f32.mrf.mxu0
    %739 = vdwg.mxu0
    %741 = vrot.lane.b32.xlu0 %v693, 32
    %v742 = vpop.permute.xlu0 %741
    %v744 = vsel %vm189, %v742, 0
    %746 = vmatprep.subr.bf16.mxu0 0
    %747 = vmatpush1.bf16.msra.mxu0 0
    %748 = vmatprep.subr.bf16.mxu0 0
    %749 = vmatpush1.bf16.msra.mxu0 0
    %750 = vmatprep.subr.bf16.mxu0 0
    %751 = vmatpush1.bf16.msra.mxu0 0
    %752 = vmatprep.subr.bf16.mxu0 0
    %753 = vmatpush1.bf16.msra.mxu0 0
    %754 = vmatprep.subr.bf16.mxu0 0
    %755 = vmatpush1.bf16.msra.mxu0 0
    %756 = vmatprep.subr.bf16.mxu0 0
    %757 = vmatpush1.bf16.msra.mxu0 0
    %758 = vmatprep.subr.bf16.mxu0 0
    %759 = vmatpush1.bf16.msra.mxu0 %v186
    %760 = vmatprep.subr.bf16.mxu0 0
    %761 = vmatpush1.bf16.msra.mxu0 %v185
    %762 = vmatprep.subr.bf16.mxu0 0
    %763 = vmatpush2.bf16.msra.mxu0 0
    %764 = vmatprep.subr.bf16.mxu0 0
    %765 = vmatpush2.bf16.msra.mxu0 0
    %766 = vmatprep.subr.bf16.mxu0 0
    %767 = vmatpush2.bf16.msra.mxu0 0
    %768 = vmatprep.subr.bf16.mxu0 0
    %769 = vmatpush2.bf16.msra.mxu0 0
    %770 = vmatprep.subr.bf16.mxu0 0
    %771 = vmatpush2.bf16.msra.mxu0 0
    %772 = vmatprep.subr.bf16.mxu0 0
    %773 = vmatpush2.bf16.msra.mxu0 0
    %774 = vmatprep.subr.bf16.mxu0 0
    %775 = vmatpush2.bf16.msra.mxu0 0
    %776 = vmatprep.subr.bf16.mxu0 0
    %777 = vmatpush2.bf16.msra.mxu0 0
    %778 = vmatprep.mubr.bf16.mxu0 0
    %779 = vmatmul.mubr.bf16.gmra.mxu0 %v744
    %v780 = vpop.f32.mrf.mxu0
    %v781 = vadd.f32 0.0, %v780
    %v782 = vpop.f32.mrf.mxu0
    %v783 = vpop.f32.mrf.mxu0
    %v784 = vpop.f32.mrf.mxu0
    %785 = vdwg.mxu0
    %786 = vmatprep.subr.bf16.mxu0 0
    %787 = vmatpush1.bf16.msra.mxu0 0
    %788 = vmatprep.subr.bf16.mxu0 0
    %789 = vmatpush1.bf16.msra.mxu0 0
    %790 = vmatprep.subr.bf16.mxu0 0
    %791 = vmatpush1.bf16.msra.mxu0 0
    %792 = vmatprep.subr.bf16.mxu0 0
    %793 = vmatpush1.bf16.msra.mxu0 0
    %794 = vmatprep.subr.bf16.mxu0 %v264
    %795 = vmatpush1.bf16.msra.mxu0 %v263
    %796 = vmatprep.subr.bf16.mxu0 %v262
    %797 = vmatpush1.bf16.msra.mxu0 %v261
    %798 = vmatprep.subr.bf16.mxu0 %v260
    %799 = vmatpush1.bf16.msra.mxu0 %v259
    %800 = vmatprep.subr.bf16.mxu0 %v258
    %801 = vmatpush1.bf16.msra.mxu0 %v257
    %802 = vmatprep.subr.bf16.mxu0 0
    %803 = vmatpush2.bf16.msra.mxu0 0
    %804 = vmatprep.subr.bf16.mxu0 0
    %805 = vmatpush2.bf16.msra.mxu0 0
    %806 = vmatprep.subr.bf16.mxu0 0
    %807 = vmatpush2.bf16.msra.mxu0 0
    %808 = vmatprep.subr.bf16.mxu0 0
    %809 = vmatpush2.bf16.msra.mxu0 0
    %810 = vmatprep.subr.bf16.mxu0 0
    %811 = vmatpush2.bf16.msra.mxu0 0
    %812 = vmatprep.subr.bf16.mxu0 0
    %813 = vmatpush2.bf16.msra.mxu0 0
    %814 = vmatprep.subr.bf16.mxu0 0
    %815 = vmatpush2.bf16.msra.mxu0 0
    %816 = vmatprep.subr.bf16.mxu0 0
    %817 = vmatpush2.bf16.msra.mxu0 0
    %818 = vmatprep.mubr.bf16.mxu0 0
    %819 = vmatmul.mubr.bf16.gmra.mxu0 %v622
    %v820 = vpop.f32.mrf.mxu0
    %v821 = vadd.f32 0.0, %v820
    %v822 = vpop.f32.mrf.mxu0
    %v823 = vadd.f32 0.0, %v822
    %v824 = vpop.f32.mrf.mxu0
    %v825 = vpop.f32.mrf.mxu0
    %826 = vdwg.mxu0
    %v827 = vadd.f32 %v734, %v821
    %v828 = vadd.f32 %v736, %v823
    %v829 = vadd.f32 %v827, %v827
    %v830 = vadd.f32 %v828, %v828
    %v831 = vsel %vm110, %v829, %v827
    %v832 = vsel %vm111, %v830, %v828
    %v833 = vxor.u32 %v831, 2147483648
    %v834 = vxor.u32 %v832, 2147483648
    %v835 = vmul.f32 %v833, 1.442695
    %v836 = vpow.pop %v835
    %v837 = vmul.f32 %v834, 1.442695
    %v838 = vpow.pop %v837
    %v839 = vadd.f32 %v836, 1.0
    %v840 = vadd.f32 %v838, 1.0
    %v841 = vrcp.pop %v839
    %v842 = vmul.f32 1.0, %v841
    %v843 = vrcp.pop %v840
    %v844 = vmul.f32 1.0, %v843
    %v845 = vadd.f32 %v842, %v842
    %v846 = vadd.f32 %v844, %v844
    %v847 = vsub.f32 %v845, 1.0
    %v848 = vsub.f32 %v846, 1.0
    %v849 = vsel %vm110, %v847, %v842
    %v850 = vsel %vm111, %v848, %v844
    %v851 = vmul.f32 %v849, %v614
    %v852 = vmul.f32 %v849, %v850
    %854 = vrot.lane.b32.xlu0 %v852, 64
    %v855 = vpop.permute.xlu0 %854
    %v857 = vadd.f32 %v851, %v855
    %v858 = vtanh.pop %v857
    %v859 = vmul.f32 %v850, %v858
    %v860 = vpack.c.bf16 %v859, %v859
    %862 = vrot.lane.b32.xlu0 %v860, 64
    %v863 = vpop.permute.xlu0 %862
    %v865 = vsel %vm273, %v863, 0
    %867 = vmatprep.subr.bf16.mxu0 0
    %868 = vmatpush1.bf16.msra.mxu0 0
    %869 = vmatprep.subr.bf16.mxu0 0
    %870 = vmatpush1.bf16.msra.mxu0 0
    %871 = vmatprep.subr.bf16.mxu0 0
    %872 = vmatpush1.bf16.msra.mxu0 0
    %873 = vmatprep.subr.bf16.mxu0 0
    %874 = vmatpush1.bf16.msra.mxu0 0
    %875 = vmatprep.subr.bf16.mxu0 0
    %876 = vmatpush1.bf16.msra.mxu0 %v373
    %877 = vmatprep.subr.bf16.mxu0 0
    %878 = vmatpush1.bf16.msra.mxu0 %v372
    %879 = vmatprep.subr.bf16.mxu0 0
    %880 = vmatpush1.bf16.msra.mxu0 %v371
    %881 = vmatprep.subr.bf16.mxu0 0
    %882 = vmatpush1.bf16.msra.mxu0 %v370
    %883 = vmatprep.subr.bf16.mxu0 0
    %884 = vmatpush2.bf16.msra.mxu0 0
    %885 = vmatprep.subr.bf16.mxu0 0
    %886 = vmatpush2.bf16.msra.mxu0 0
    %887 = vmatprep.subr.bf16.mxu0 0
    %888 = vmatpush2.bf16.msra.mxu0 0
    %889 = vmatprep.subr.bf16.mxu0 0
    %890 = vmatpush2.bf16.msra.mxu0 0
    %891 = vmatprep.subr.bf16.mxu0 0
    %892 = vmatpush2.bf16.msra.mxu0 0
    %893 = vmatprep.subr.bf16.mxu0 0
    %894 = vmatpush2.bf16.msra.mxu0 0
    %895 = vmatprep.subr.bf16.mxu0 0
    %896 = vmatpush2.bf16.msra.mxu0 0
    %897 = vmatprep.subr.bf16.mxu0 0
    %898 = vmatpush2.bf16.msra.mxu0 0
    %899 = vmatprep.mubr.bf16.mxu0 0
    %900 = vmatmul.mubr.bf16.gmra.mxu0 %v865
    %v901 = vpop.f32.mrf.mxu0
    %v902 = vadd.f32 %v781, %v901
    %v903 = vpop.f32.mrf.mxu0
    %v904 = vpop.f32.mrf.mxu0
    %v905 = vpop.f32.mrf.mxu0
    %906 = vdwg.mxu0
    %v907 = vadd.f32 %v902, %v101
    %v908 = vadd.f32 %v907, %v907
    %v909 = vsel %vm114, %v908, %v907
    %v910 = vxor.u32 %v909, 2147483648
    %v911 = vmul.f32 %v910, 1.442695
    %v912 = vpow.pop %v911
    %v913 = vadd.f32 %v912, 1.0
    %v914 = vrcp.pop %v913
    %v915 = vmul.f32 1.0, %v914
    %v916 = vadd.f32 %v915, %v915
    %v917 = vsub.f32 %v916, 1.0
    %v918 = vsel %vm114, %v917, %v915
    %v919 = vmul.f32 %v918, %v686
    %921 = vrot.lane.b32.xlu0 %v918, 64
    %v922 = vpop.permute.xlu0 %921
    %v924 = vmul.f32 %v918, %v922
    %926 = vrot.lane.b32.xlu0 %v924, 32
    %v927 = vpop.permute.xlu0 %926
    %v929 = vadd.f32 %v919, %v927
    %v930 = vtanh.pop %v929
    %932 = vrot.lane.b32.xlu0 %v930, 64
    %v933 = vpop.permute.xlu0 %932
    %v935 = vmul.f32 %v918, %v933
    %v936 = vpack.c.bf16 %v935, %v935
    %s937 = scalar_lea.vmem %s0, 3
    %v938 = vld [vmem:[%s937] sm:$0x1]
    %v940 = vsel %vm125, %v938, 0
    %942 = vmatprep.subr.bf16.mxu0 0
    %943 = vmatpush1.bf16.msra.mxu0 0
    %944 = vmatprep.subr.bf16.mxu0 0
    %945 = vmatpush1.bf16.msra.mxu0 0
    %946 = vmatprep.subr.bf16.mxu0 0
    %947 = vmatpush1.bf16.msra.mxu0 0
    %948 = vmatprep.subr.bf16.mxu0 0
    %949 = vmatpush1.bf16.msra.mxu0 0
    %950 = vmatprep.subr.bf16.mxu0 0
    %951 = vmatpush1.bf16.msra.mxu0 0
    %952 = vmatprep.subr.bf16.mxu0 0
    %953 = vmatpush1.bf16.msra.mxu0 0
    %954 = vmatprep.subr.bf16.mxu0 0
    %955 = vmatpush1.bf16.msra.mxu0 0
    %956 = vmatprep.subr.bf16.mxu0 %v134
    %957 = vmatpush1.bf16.msra.mxu0 %v131
    %958 = vmatprep.subr.bf16.mxu0 0
    %959 = vmatpush2.bf16.msra.mxu0 0
    %960 = vmatprep.subr.bf16.mxu0 0
    %961 = vmatpush2.bf16.msra.mxu0 0
    %962 = vmatprep.subr.bf16.mxu0 0
    %963 = vmatpush2.bf16.msra.mxu0 0
    %964 = vmatprep.subr.bf16.mxu0 0
    %965 = vmatpush2.bf16.msra.mxu0 0
    %966 = vmatprep.subr.bf16.mxu0 0
    %967 = vmatpush2.bf16.msra.mxu0 0
    %968 = vmatprep.subr.bf16.mxu0 0
    %969 = vmatpush2.bf16.msra.mxu0 0
    %970 = vmatprep.subr.bf16.mxu0 0
    %971 = vmatpush2.bf16.msra.mxu0 0
    %972 = vmatprep.subr.bf16.mxu0 0
    %973 = vmatpush2.bf16.msra.mxu0 0
    %974 = vmatprep.mubr.bf16.mxu0 0
    %975 = vmatmul.mubr.bf16.gmra.mxu0 %v940
    %v976 = vpop.f32.mrf.mxu0
    %v977 = vadd.f32 %v89, %v976
    %v978 = vpop.f32.mrf.mxu0
    %v979 = vadd.f32 %v93, %v978
    %v980 = vpop.f32.mrf.mxu0
    %v981 = vpop.f32.mrf.mxu0
    %982 = vdwg.mxu0
    %984 = vrot.lane.b32.xlu0 %v936, 32
    %v985 = vpop.permute.xlu0 %984
    %v987 = vsel %vm189, %v985, 0
    %989 = vmatprep.subr.bf16.mxu0 0
    %990 = vmatpush1.bf16.msra.mxu0 0
    %991 = vmatprep.subr.bf16.mxu0 0
    %992 = vmatpush1.bf16.msra.mxu0 0
    %993 = vmatprep.subr.bf16.mxu0 0
    %994 = vmatpush1.bf16.msra.mxu0 0
    %995 = vmatprep.subr.bf16.mxu0 0
    %996 = vmatpush1.bf16.msra.mxu0 0
    %997 = vmatprep.subr.bf16.mxu0 0
    %998 = vmatpush1.bf16.msra.mxu0 0
    %999 = vmatprep.subr.bf16.mxu0 0
    %1000 = vmatpush1.bf16.msra.mxu0 0
    %1001 = vmatprep.subr.bf16.mxu0 0
    %1002 = vmatpush1.bf16.msra.mxu0 %v186
    %1003 = vmatprep.subr.bf16.mxu0 0
    %1004 = vmatpush1.bf16.msra.mxu0 %v185
    %1005 = vmatprep.subr.bf16.mxu0 0
    %1006 = vmatpush2.bf16.msra.mxu0 0
    %1007 = vmatprep.subr.bf16.mxu0 0
    %1008 = vmatpush2.bf16.msra.mxu0 0
    %1009 = vmatprep.subr.bf16.mxu0 0
    %1010 = vmatpush2.bf16.msra.mxu0 0
    %1011 = vmatprep.subr.bf16.mxu0 0
    %1012 = vmatpush2.bf16.msra.mxu0 0
    %1013 = vmatprep.subr.bf16.mxu0 0
    %1014 = vmatpush2.bf16.msra.mxu0 0
    %1015 = vmatprep.subr.bf16.mxu0 0
    %1016 = vmatpush2.bf16.msra.mxu0 0
    %1017 = vmatprep.subr.bf16.mxu0 0
    %1018 = vmatpush2.bf16.msra.mxu0 0
    %1019 = vmatprep.subr.bf16.mxu0 0
    %1020 = vmatpush2.bf16.msra.mxu0 0
    %1021 = vmatprep.mubr.bf16.mxu0 0
    %1022 = vmatmul.mubr.bf16.gmra.mxu0 %v987
    %v1023 = vpop.f32.mrf.mxu0
    %v1024 = vadd.f32 0.0, %v1023
    %v1025 = vpop.f32.mrf.mxu0
    %v1026 = vpop.f32.mrf.mxu0
    %v1027 = vpop.f32.mrf.mxu0
    %1028 = vdwg.mxu0
    %1029 = vmatprep.subr.bf16.mxu0 0
    %1030 = vmatpush1.bf16.msra.mxu0 0
    %1031 = vmatprep.subr.bf16.mxu0 0
    %1032 = vmatpush1.bf16.msra.mxu0 0
    %1033 = vmatprep.subr.bf16.mxu0 0
    %1034 = vmatpush1.bf16.msra.mxu0 0
    %1035 = vmatprep.subr.bf16.mxu0 0
    %1036 = vmatpush1.bf16.msra.mxu0 0
    %1037 = vmatprep.subr.bf16.mxu0 %v264
    %1038 = vmatpush1.bf16.msra.mxu0 %v263
    %1039 = vmatprep.subr.bf16.mxu0 %v262
    %1040 = vmatpush1.bf16.msra.mxu0 %v261
    %1041 = vmatprep.subr.bf16.mxu0 %v260
    %1042 = vmatpush1.bf16.msra.mxu0 %v259
    %1043 = vmatprep.subr.bf16.mxu0 %v258
    %1044 = vmatpush1.bf16.msra.mxu0 %v257
    %1045 = vmatprep.subr.bf16.mxu0 0
    %1046 = vmatpush2.bf16.msra.mxu0 0
    %1047 = vmatprep.subr.bf16.mxu0 0
    %1048 = vmatpush2.bf16.msra.mxu0 0
    %1049 = vmatprep.subr.bf16.mxu0 0
    %1050 = vmatpush2.bf16.msra.mxu0 0
    %1051 = vmatprep.subr.bf16.mxu0 0
    %1052 = vmatpush2.bf16.msra.mxu0 0
    %1053 = vmatprep.subr.bf16.mxu0 0
    %1054 = vmatpush2.bf16.msra.mxu0 0
    %1055 = vmatprep.subr.bf16.mxu0 0
    %1056 = vmatpush2.bf16.msra.mxu0 0
    %1057 = vmatprep.subr.bf16.mxu0 0
    %1058 = vmatpush2.bf16.msra.mxu0 0
    %1059 = vmatprep.subr.bf16.mxu0 0
    %1060 = vmatpush2.bf16.msra.mxu0 0
    %1061 = vmatprep.mubr.bf16.mxu0 0
    %1062 = vmatmul.mubr.bf16.gmra.mxu0 %v865
    %v1063 = vpop.f32.mrf.mxu0
    %v1064 = vadd.f32 0.0, %v1063
    %v1065 = vpop.f32.mrf.mxu0
    %v1066 = vadd.f32 0.0, %v1065
    %v1067 = vpop.f32.mrf.mxu0
    %v1068 = vpop.f32.mrf.mxu0
    %1069 = vdwg.mxu0
    %v1070 = vadd.f32 %v977, %v1064
    %v1071 = vadd.f32 %v979, %v1066
    %v1072 = vadd.f32 %v1070, %v1070
    %v1073 = vadd.f32 %v1071, %v1071
    %v1074 = vsel %vm110, %v1072, %v1070
    %v1075 = vsel %vm111, %v1073, %v1071
    %v1076 = vxor.u32 %v1074, 2147483648
    %v1077 = vxor.u32 %v1075, 2147483648
    %v1078 = vmul.f32 %v1076, 1.442695
    %v1079 = vpow.pop %v1078
    %v1080 = vmul.f32 %v1077, 1.442695
    %v1081 = vpow.pop %v1080
    %v1082 = vadd.f32 %v1079, 1.0
    %v1083 = vadd.f32 %v1081, 1.0
    %v1084 = vrcp.pop %v1082
    %v1085 = vmul.f32 1.0, %v1084
    %v1086 = vrcp.pop %v1083
    %v1087 = vmul.f32 1.0, %v1086
    %v1088 = vadd.f32 %v1085, %v1085
    %v1089 = vadd.f32 %v1087, %v1087
    %v1090 = vsub.f32 %v1088, 1.0
    %v1091 = vsub.f32 %v1089, 1.0
    %v1092 = vsel %vm110, %v1090, %v1085
    %v1093 = vsel %vm111, %v1091, %v1087
    %v1094 = vmul.f32 %v1092, %v857
    %v1095 = vmul.f32 %v1092, %v1093
    %1097 = vrot.lane.b32.xlu0 %v1095, 64
    %v1098 = vpop.permute.xlu0 %1097
    %v1100 = vadd.f32 %v1094, %v1098
    %v1101 = vtanh.pop %v1100
    %v1102 = vmul.f32 %v1093, %v1101
    %v1103 = vpack.c.bf16 %v1102, %v1102
    %1105 = vrot.lane.b32.xlu0 %v1103, 64
    %v1106 = vpop.permute.xlu0 %1105
    %v1108 = vsel %vm273, %v1106, 0
    %1110 = vmatprep.subr.bf16.mxu0 0
    %1111 = vmatpush1.bf16.msra.mxu0 0
    %1112 = vmatprep.subr.bf16.mxu0 0
    %1113 = vmatpush1.bf16.msra.mxu0 0
    %1114 = vmatprep.subr.bf16.mxu0 0
    %1115 = vmatpush1.bf16.msra.mxu0 0
    %1116 = vmatprep.subr.bf16.mxu0 0
    %1117 = vmatpush1.bf16.msra.mxu0 0
    %1118 = vmatprep.subr.bf16.mxu0 0
    %1119 = vmatpush1.bf16.msra.mxu0 %v373
    %1120 = vmatprep.subr.bf16.mxu0 0
    %1121 = vmatpush1.bf16.msra.mxu0 %v372
    %1122 = vmatprep.subr.bf16.mxu0 0
    %1123 = vmatpush1.bf16.msra.mxu0 %v371
    %1124 = vmatprep.subr.bf16.mxu0 0
    %1125 = vmatpush1.bf16.msra.mxu0 %v370
    %1126 = vmatprep.subr.bf16.mxu0 0
    %1127 = vmatpush2.bf16.msra.mxu0 0
    %1128 = vmatprep.subr.bf16.mxu0 0
    %1129 = vmatpush2.bf16.msra.mxu0 0
    %1130 = vmatprep.subr.bf16.mxu0 0
    %1131 = vmatpush2.bf16.msra.mxu0 0
    %1132 = vmatprep.subr.bf16.mxu0 0
    %1133 = vmatpush2.bf16.msra.mxu0 0
    %1134 = vmatprep.subr.bf16.mxu0 0
    %1135 = vmatpush2.bf16.msra.mxu0 0
    %1136 = vmatprep.subr.bf16.mxu0 0
    %1137 = vmatpush2.bf16.msra.mxu0 0
    %1138 = vmatprep.subr.bf16.mxu0 0
    %1139 = vmatpush2.bf16.msra.mxu0 0
    %1140 = vmatprep.subr.bf16.mxu0 0
    %1141 = vmatpush2.bf16.msra.mxu0 0
    %1142 = vmatprep.mubr.bf16.mxu0 0
    %1143 = vmatmul.mubr.bf16.gmra.mxu0 %v1108
    %v1144 = vpop.f32.mrf.mxu0
    %v1145 = vadd.f32 %v1024, %v1144
    %v1146 = vpop.f32.mrf.mxu0
    %v1147 = vpop.f32.mrf.mxu0
    %v1148 = vpop.f32.mrf.mxu0
    %1149 = vdwg.mxu0
    %v1150 = vadd.f32 %v1145, %v101
    %v1151 = vadd.f32 %v1150, %v1150
    %v1152 = vsel %vm114, %v1151, %v1150
    %v1153 = vxor.u32 %v1152, 2147483648
    %v1154 = vmul.f32 %v1153, 1.442695
    %v1155 = vpow.pop %v1154
    %v1156 = vadd.f32 %v1155, 1.0
    %v1157 = vrcp.pop %v1156
    %v1158 = vmul.f32 1.0, %v1157
    %v1159 = vadd.f32 %v1158, %v1158
    %v1160 = vsub.f32 %v1159, 1.0
    %v1161 = vsel %vm114, %v1160, %v1158
    %v1162 = vmul.f32 %v1161, %v929
    %1164 = vrot.lane.b32.xlu0 %v1161, 64
    %v1165 = vpop.permute.xlu0 %1164
    %v1167 = vmul.f32 %v1161, %v1165
    %1169 = vrot.lane.b32.xlu0 %v1167, 32
    %v1170 = vpop.permute.xlu0 %1169
    %v1172 = vadd.f32 %v1162, %v1170
    %v1173 = vtanh.pop %v1172
    %1175 = vrot.lane.b32.xlu0 %v1173, 64
    %v1176 = vpop.permute.xlu0 %1175
    %v1178 = vmul.f32 %v1161, %v1176
    %v1179 = vpack.c.bf16 %v1178, %v1178
    %s1180 = scalar_lea.vmem %s0, 4
    %v1181 = vld [vmem:[%s1180] sm:$0x1]
    %v1183 = vsel %vm125, %v1181, 0
    %1185 = vmatprep.subr.bf16.mxu0 0
    %1186 = vmatpush1.bf16.msra.mxu0 0
    %1187 = vmatprep.subr.bf16.mxu0 0
    %1188 = vmatpush1.bf16.msra.mxu0 0
    %1189 = vmatprep.subr.bf16.mxu0 0
    %1190 = vmatpush1.bf16.msra.mxu0 0
    %1191 = vmatprep.subr.bf16.mxu0 0
    %1192 = vmatpush1.bf16.msra.mxu0 0
    %1193 = vmatprep.subr.bf16.mxu0 0
    %1194 = vmatpush1.bf16.msra.mxu0 0
    %1195 = vmatprep.subr.bf16.mxu0 0
    %1196 = vmatpush1.bf16.msra.mxu0 0
    %1197 = vmatprep.subr.bf16.mxu0 0
    %1198 = vmatpush1.bf16.msra.mxu0 0
    %1199 = vmatprep.subr.bf16.mxu0 %v134
    %1200 = vmatpush1.bf16.msra.mxu0 %v131
    %1201 = vmatprep.subr.bf16.mxu0 0
    %1202 = vmatpush2.bf16.msra.mxu0 0
    %1203 = vmatprep.subr.bf16.mxu0 0
    %1204 = vmatpush2.bf16.msra.mxu0 0
    %1205 = vmatprep.subr.bf16.mxu0 0
    %1206 = vmatpush2.bf16.msra.mxu0 0
    %1207 = vmatprep.subr.bf16.mxu0 0
    %1208 = vmatpush2.bf16.msra.mxu0 0
    %1209 = vmatprep.subr.bf16.mxu0 0
    %1210 = vmatpush2.bf16.msra.mxu0 0
    %1211 = vmatprep.subr.bf16.mxu0 0
    %1212 = vmatpush2.bf16.msra.mxu0 0
    %1213 = vmatprep.subr.bf16.mxu0 0
    %1214 = vmatpush2.bf16.msra.mxu0 0
    %1215 = vmatprep.subr.bf16.mxu0 0
    %1216 = vmatpush2.bf16.msra.mxu0 0
    %1217 = vmatprep.mubr.bf16.mxu0 0
    %1218 = vmatmul.mubr.bf16.gmra.mxu0 %v1183
    %v1219 = vpop.f32.mrf.mxu0
    %v1220 = vadd.f32 %v89, %v1219
    %v1221 = vpop.f32.mrf.mxu0
    %v1222 = vadd.f32 %v93, %v1221
    %v1223 = vpop.f32.mrf.mxu0
    %v1224 = vpop.f32.mrf.mxu0
    %1225 = vdwg.mxu0
    %1227 = vrot.lane.b32.xlu0 %v1179, 32
    %v1228 = vpop.permute.xlu0 %1227
    %v1230 = vsel %vm189, %v1228, 0
    %1232 = vmatprep.subr.bf16.mxu0 0
    %1233 = vmatpush1.bf16.msra.mxu0 0
    %1234 = vmatprep.subr.bf16.mxu0 0
    %1235 = vmatpush1.bf16.msra.mxu0 0
    %1236 = vmatprep.subr.bf16.mxu0 0
    %1237 = vmatpush1.bf16.msra.mxu0 0
    %1238 = vmatprep.subr.bf16.mxu0 0
    %1239 = vmatpush1.bf16.msra.mxu0 0
    %1240 = vmatprep.subr.bf16.mxu0 0
    %1241 = vmatpush1.bf16.msra.mxu0 0
    %1242 = vmatprep.subr.bf16.mxu0 0
    %1243 = vmatpush1.bf16.msra.mxu0 0
    %1244 = vmatprep.subr.bf16.mxu0 0
    %1245 = vmatpush1.bf16.msra.mxu0 %v186
    %1246 = vmatprep.subr.bf16.mxu0 0
    %1247 = vmatpush1.bf16.msra.mxu0 %v185
    %1248 = vmatprep.subr.bf16.mxu0 0
    %1249 = vmatpush2.bf16.msra.mxu0 0
    %1250 = vmatprep.subr.bf16.mxu0 0
    %1251 = vmatpush2.bf16.msra.mxu0 0
    %1252 = vmatprep.subr.bf16.mxu0 0
    %1253 = vmatpush2.bf16.msra.mxu0 0
    %1254 = vmatprep.subr.bf16.mxu0 0
    %1255 = vmatpush2.bf16.msra.mxu0 0
    %1256 = vmatprep.subr.bf16.mxu0 0
    %1257 = vmatpush2.bf16.msra.mxu0 0
    %1258 = vmatprep.subr.bf16.mxu0 0
    %1259 = vmatpush2.bf16.msra.mxu0 0
    %1260 = vmatprep.subr.bf16.mxu0 0
    %1261 = vmatpush2.bf16.msra.mxu0 0
    %1262 = vmatprep.subr.bf16.mxu0 0
    %1263 = vmatpush2.bf16.msra.mxu0 0
    %1264 = vmatprep.mubr.bf16.mxu0 0
    %1265 = vmatmul.mubr.bf16.gmra.mxu0 %v1230
    %v1266 = vpop.f32.mrf.mxu0
    %v1267 = vadd.f32 0.0, %v1266
    %v1268 = vpop.f32.mrf.mxu0
    %v1269 = vpop.f32.mrf.mxu0
    %v1270 = vpop.f32.mrf.mxu0
    %1271 = vdwg.mxu0
    %1272 = vmatprep.subr.bf16.mxu0 0
    %1273 = vmatpush1.bf16.msra.mxu0 0
    %1274 = vmatprep.subr.bf16.mxu0 0
    %1275 = vmatpush1.bf16.msra.mxu0 0
    %1276 = vmatprep.subr.bf16.mxu0 0
    %1277 = vmatpush1.bf16.msra.mxu0 0
    %1278 = vmatprep.subr.bf16.mxu0 0
    %1279 = vmatpush1.bf16.msra.mxu0 0
    %1280 = vmatprep.subr.bf16.mxu0 %v264
    %1281 = vmatpush1.bf16.msra.mxu0 %v263
    %1282 = vmatprep.subr.bf16.mxu0 %v262
    %1283 = vmatpush1.bf16.msra.mxu0 %v261
    %1284 = vmatprep.subr.bf16.mxu0 %v260
    %1285 = vmatpush1.bf16.msra.mxu0 %v259
    %1286 = vmatprep.subr.bf16.mxu0 %v258
    %1287 = vmatpush1.bf16.msra.mxu0 %v257
    %1288 = vmatprep.subr.bf16.mxu0 0
    %1289 = vmatpush2.bf16.msra.mxu0 0
    %1290 = vmatprep.subr.bf16.mxu0 0
    %1291 = vmatpush2.bf16.msra.mxu0 0
    %1292 = vmatprep.subr.bf16.mxu0 0
    %1293 = vmatpush2.bf16.msra.mxu0 0
    %1294 = vmatprep.subr.bf16.mxu0 0
    %1295 = vmatpush2.bf16.msra.mxu0 0
    %1296 = vmatprep.subr.bf16.mxu0 0
    %1297 = vmatpush2.bf16.msra.mxu0 0
    %1298 = vmatprep.subr.bf16.mxu0 0
    %1299 = vmatpush2.bf16.msra.mxu0 0
    %1300 = vmatprep.subr.bf16.mxu0 0
    %1301 = vmatpush2.bf16.msra.mxu0 0
    %1302 = vmatprep.subr.bf16.mxu0 0
    %1303 = vmatpush2.bf16.msra.mxu0 0
    %1304 = vmatprep.mubr.bf16.mxu0 0
    %1305 = vmatmul.mubr.bf16.gmra.mxu0 %v1108
    %v1306 = vpop.f32.mrf.mxu0
    %v1307 = vadd.f32 0.0, %v1306
    %v1308 = vpop.f32.mrf.mxu0
    %v1309 = vadd.f32 0.0, %v1308
    %v1310 = vpop.f32.mrf.mxu0
    %v1311 = vpop.f32.mrf.mxu0
    %1312 = vdwg.mxu0
    %v1313 = vadd.f32 %v1220, %v1307
    %v1314 = vadd.f32 %v1222, %v1309
    %v1315 = vadd.f32 %v1313, %v1313
    %v1316 = vadd.f32 %v1314, %v1314
    %v1317 = vsel %vm110, %v1315, %v1313
    %v1318 = vsel %vm111, %v1316, %v1314
    %v1319 = vxor.u32 %v1317, 2147483648
    %v1320 = vxor.u32 %v1318, 2147483648
    %v1321 = vmul.f32 %v1319, 1.442695
    %v1322 = vpow.pop %v1321
    %v1323 = vmul.f32 %v1320, 1.442695
    %v1324 = vpow.pop %v1323
    %v1325 = vadd.f32 %v1322, 1.0
    %v1326 = vadd.f32 %v1324, 1.0
    %v1327 = vrcp.pop %v1325
    %v1328 = vmul.f32 1.0, %v1327
    %v1329 = vrcp.pop %v1326
    %v1330 = vmul.f32 1.0, %v1329
    %v1331 = vadd.f32 %v1328, %v1328
    %v1332 = vadd.f32 %v1330, %v1330
    %v1333 = vsub.f32 %v1331, 1.0
    %v1334 = vsub.f32 %v1332, 1.0
    %v1335 = vsel %vm110, %v1333, %v1328
    %v1336 = vsel %vm111, %v1334, %v1330
    %v1337 = vmul.f32 %v1335, %v1100
    %v1338 = vmul.f32 %v1335, %v1336
    %1340 = vrot.lane.b32.xlu0 %v1338, 64
    %v1341 = vpop.permute.xlu0 %1340
    %v1343 = vadd.f32 %v1337, %v1341
    %v1344 = vtanh.pop %v1343
    %v1345 = vmul.f32 %v1336, %v1344
    %v1346 = vpack.c.bf16 %v1345, %v1345
    %1348 = vrot.lane.b32.xlu0 %v1346, 64
    %v1349 = vpop.permute.xlu0 %1348
    %v1351 = vsel %vm273, %v1349, 0
    %1353 = vmatprep.subr.bf16.mxu0 0
    %1354 = vmatpush1.bf16.msra.mxu0 0
    %1355 = vmatprep.subr.bf16.mxu0 0
    %1356 = vmatpush1.bf16.msra.mxu0 0
    %1357 = vmatprep.subr.bf16.mxu0 0
    %1358 = vmatpush1.bf16.msra.mxu0 0
    %1359 = vmatprep.subr.bf16.mxu0 0
    %1360 = vmatpush1.bf16.msra.mxu0 0
    %1361 = vmatprep.subr.bf16.mxu0 0
    %1362 = vmatpush1.bf16.msra.mxu0 %v373
    %1363 = vmatprep.subr.bf16.mxu0 0
    %1364 = vmatpush1.bf16.msra.mxu0 %v372
    %1365 = vmatprep.subr.bf16.mxu0 0
    %1366 = vmatpush1.bf16.msra.mxu0 %v371
    %1367 = vmatprep.subr.bf16.mxu0 0
    %1368 = vmatpush1.bf16.msra.mxu0 %v370
    %1369 = vmatprep.subr.bf16.mxu0 0
    %1370 = vmatpush2.bf16.msra.mxu0 0
    %1371 = vmatprep.subr.bf16.mxu0 0
    %1372 = vmatpush2.bf16.msra.mxu0 0
    %1373 = vmatprep.subr.bf16.mxu0 0
    %1374 = vmatpush2.bf16.msra.mxu0 0
    %1375 = vmatprep.subr.bf16.mxu0 0
    %1376 = vmatpush2.bf16.msra.mxu0 0
    %1377 = vmatprep.subr.bf16.mxu0 0
    %1378 = vmatpush2.bf16.msra.mxu0 0
    %1379 = vmatprep.subr.bf16.mxu0 0
    %1380 = vmatpush2.bf16.msra.mxu0 0
    %1381 = vmatprep.subr.bf16.mxu0 0
    %1382 = vmatpush2.bf16.msra.mxu0 0
    %1383 = vmatprep.subr.bf16.mxu0 0
    %1384 = vmatpush2.bf16.msra.mxu0 0
    %1385 = vmatprep.mubr.bf16.mxu0 0
    %1386 = vmatmul.mubr.bf16.gmra.mxu0 %v1351
    %v1387 = vpop.f32.mrf.mxu0
    %v1388 = vadd.f32 %v1267, %v1387
    %v1389 = vpop.f32.mrf.mxu0
    %v1390 = vpop.f32.mrf.mxu0
    %v1391 = vpop.f32.mrf.mxu0
    %1392 = vdwg.mxu0
    %v1393 = vadd.f32 %v1388, %v101
    %v1394 = vadd.f32 %v1393, %v1393
    %v1395 = vsel %vm114, %v1394, %v1393
    %v1396 = vxor.u32 %v1395, 2147483648
    %v1397 = vmul.f32 %v1396, 1.442695
    %v1398 = vpow.pop %v1397
    %v1399 = vadd.f32 %v1398, 1.0
    %v1400 = vrcp.pop %v1399
    %v1401 = vmul.f32 1.0, %v1400
    %v1402 = vadd.f32 %v1401, %v1401
    %v1403 = vsub.f32 %v1402, 1.0
    %v1404 = vsel %vm114, %v1403, %v1401
    %v1405 = vmul.f32 %v1404, %v1172
    %1407 = vrot.lane.b32.xlu0 %v1404, 64
    %v1408 = vpop.permute.xlu0 %1407
    %v1410 = vmul.f32 %v1404, %v1408
    %1412 = vrot.lane.b32.xlu0 %v1410, 32
    %v1413 = vpop.permute.xlu0 %1412
    %v1415 = vadd.f32 %v1405, %v1413
    %v1416 = vtanh.pop %v1415
    %1418 = vrot.lane.b32.xlu0 %v1416, 64
    %v1419 = vpop.permute.xlu0 %1418
    %v1421 = vmul.f32 %v1404, %v1419
    %v1422 = vpack.c.bf16 %v1421, %v1421
    %s1423 = scalar_lea.vmem %s0, 5
    %v1424 = vld [vmem:[%s1423] sm:$0x1]
    %v1426 = vsel %vm125, %v1424, 0
    %1428 = vmatprep.subr.bf16.mxu0 0
    %1429 = vmatpush1.bf16.msra.mxu0 0
    %1430 = vmatprep.subr.bf16.mxu0 0
    %1431 = vmatpush1.bf16.msra.mxu0 0
    %1432 = vmatprep.subr.bf16.mxu0 0
    %1433 = vmatpush1.bf16.msra.mxu0 0
    %1434 = vmatprep.subr.bf16.mxu0 0
    %1435 = vmatpush1.bf16.msra.mxu0 0
    %1436 = vmatprep.subr.bf16.mxu0 0
    %1437 = vmatpush1.bf16.msra.mxu0 0
    %1438 = vmatprep.subr.bf16.mxu0 0
    %1439 = vmatpush1.bf16.msra.mxu0 0
    %1440 = vmatprep.subr.bf16.mxu0 0
    %1441 = vmatpush1.bf16.msra.mxu0 0
    %1442 = vmatprep.subr.bf16.mxu0 %v134
    %1443 = vmatpush1.bf16.msra.mxu0 %v131
    %1444 = vmatprep.subr.bf16.mxu0 0
    %1445 = vmatpush2.bf16.msra.mxu0 0
    %1446 = vmatprep.subr.bf16.mxu0 0
    %1447 = vmatpush2.bf16.msra.mxu0 0
    %1448 = vmatprep.subr.bf16.mxu0 0
    %1449 = vmatpush2.bf16.msra.mxu0 0
    %1450 = vmatprep.subr.bf16.mxu0 0
    %1451 = vmatpush2.bf16.msra.mxu0 0
    %1452 = vmatprep.subr.bf16.mxu0 0
    %1453 = vmatpush2.bf16.msra.mxu0 0
    %1454 = vmatprep.subr.bf16.mxu0 0
    %1455 = vmatpush2.bf16.msra.mxu0 0
    %1456 = vmatprep.subr.bf16.mxu0 0
    %1457 = vmatpush2.bf16.msra.mxu0 0
    %1458 = vmatprep.subr.bf16.mxu0 0
    %1459 = vmatpush2.bf16.msra.mxu0 0
    %1460 = vmatprep.mubr.bf16.mxu0 0
    %1461 = vmatmul.mubr.bf16.gmra.mxu0 %v1426
    %v1462 = vpop.f32.mrf.mxu0
    %v1463 = vadd.f32 %v89, %v1462
    %v1464 = vpop.f32.mrf.mxu0
    %v1465 = vadd.f32 %v93, %v1464
    %v1466 = vpop.f32.mrf.mxu0
    %v1467 = vpop.f32.mrf.mxu0
    %1468 = vdwg.mxu0
    %1470 = vrot.lane.b32.xlu0 %v1422, 32
    %v1471 = vpop.permute.xlu0 %1470
    %v1473 = vsel %vm189, %v1471, 0
    %1475 = vmatprep.subr.bf16.mxu0 0
    %1476 = vmatpush1.bf16.msra.mxu0 0
    %1477 = vmatprep.subr.bf16.mxu0 0
    %1478 = vmatpush1.bf16.msra.mxu0 0
    %1479 = vmatprep.subr.bf16.mxu0 0
    %1480 = vmatpush1.bf16.msra.mxu0 0
    %1481 = vmatprep.subr.bf16.mxu0 0
    %1482 = vmatpush1.bf16.msra.mxu0 0
    %1483 = vmatprep.subr.bf16.mxu0 0
    %1484 = vmatpush1.bf16.msra.mxu0 0
    %1485 = vmatprep.subr.bf16.mxu0 0
    %1486 = vmatpush1.bf16.msra.mxu0 0
    %1487 = vmatprep.subr.bf16.mxu0 0
    %1488 = vmatpush1.bf16.msra.mxu0 %v186
    %1489 = vmatprep.subr.bf16.mxu0 0
    %1490 = vmatpush1.bf16.msra.mxu0 %v185
    %1491 = vmatprep.subr.bf16.mxu0 0
    %1492 = vmatpush2.bf16.msra.mxu0 0
    %1493 = vmatprep.subr.bf16.mxu0 0
    %1494 = vmatpush2.bf16.msra.mxu0 0
    %1495 = vmatprep.subr.bf16.mxu0 0
    %1496 = vmatpush2.bf16.msra.mxu0 0
    %1497 = vmatprep.subr.bf16.mxu0 0
    %1498 = vmatpush2.bf16.msra.mxu0 0
    %1499 = vmatprep.subr.bf16.mxu0 0
    %1500 = vmatpush2.bf16.msra.mxu0 0
    %1501 = vmatprep.subr.bf16.mxu0 0
    %1502 = vmatpush2.bf16.msra.mxu0 0
    %1503 = vmatprep.subr.bf16.mxu0 0
    %1504 = vmatpush2.bf16.msra.mxu0 0
    %1505 = vmatprep.subr.bf16.mxu0 0
    %1506 = vmatpush2.bf16.msra.mxu0 0
    %1507 = vmatprep.mubr.bf16.mxu0 0
    %1508 = vmatmul.mubr.bf16.gmra.mxu0 %v1473
    %v1509 = vpop.f32.mrf.mxu0
    %v1510 = vadd.f32 0.0, %v1509
    %v1511 = vpop.f32.mrf.mxu0
    %v1512 = vpop.f32.mrf.mxu0
    %v1513 = vpop.f32.mrf.mxu0
    %1514 = vdwg.mxu0
    %1515 = vmatprep.subr.bf16.mxu0 0
    %1516 = vmatpush1.bf16.msra.mxu0 0
    %1517 = vmatprep.subr.bf16.mxu0 0
    %1518 = vmatpush1.bf16.msra.mxu0 0
    %1519 = vmatprep.subr.bf16.mxu0 0
    %1520 = vmatpush1.bf16.msra.mxu0 0
    %1521 = vmatprep.subr.bf16.mxu0 0
    %1522 = vmatpush1.bf16.msra.mxu0 0
    %1523 = vmatprep.subr.bf16.mxu0 %v264
    %1524 = vmatpush1.bf16.msra.mxu0 %v263
    %1525 = vmatprep.subr.bf16.mxu0 %v262
    %1526 = vmatpush1.bf16.msra.mxu0 %v261
    %1527 = vmatprep.subr.bf16.mxu0 %v260
    %1528 = vmatpush1.bf16.msra.mxu0 %v259
    %1529 = vmatprep.subr.bf16.mxu0 %v258
    %1530 = vmatpush1.bf16.msra.mxu0 %v257
    %1531 = vmatprep.subr.bf16.mxu0 0
    %1532 = vmatpush2.bf16.msra.mxu0 0
    %1533 = vmatprep.subr.bf16.mxu0 0
    %1534 = vmatpush2.bf16.msra.mxu0 0
    %1535 = vmatprep.subr.bf16.mxu0 0
    %1536 = vmatpush2.bf16.msra.mxu0 0
    %1537 = vmatprep.subr.bf16.mxu0 0
    %1538 = vmatpush2.bf16.msra.mxu0 0
    %1539 = vmatprep.subr.bf16.mxu0 0
    %1540 = vmatpush2.bf16.msra.mxu0 0
    %1541 = vmatprep.subr.bf16.mxu0 0
    %1542 = vmatpush2.bf16.msra.mxu0 0
    %1543 = vmatprep.subr.bf16.mxu0 0
    %1544 = vmatpush2.bf16.msra.mxu0 0
    %1545 = vmatprep.subr.bf16.mxu0 0
    %1546 = vmatpush2.bf16.msra.mxu0 0
    %1547 = vmatprep.mubr.bf16.mxu0 0
    %1548 = vmatmul.mubr.bf16.gmra.mxu0 %v1351
    %v1549 = vpop.f32.mrf.mxu0
    %v1550 = vadd.f32 0.0, %v1549
    %v1551 = vpop.f32.mrf.mxu0
    %v1552 = vadd.f32 0.0, %v1551
    %v1553 = vpop.f32.mrf.mxu0
    %v1554 = vpop.f32.mrf.mxu0
    %1555 = vdwg.mxu0
    %v1556 = vadd.f32 %v1463, %v1550
    %v1557 = vadd.f32 %v1465, %v1552
    %v1558 = vadd.f32 %v1556, %v1556
    %v1559 = vadd.f32 %v1557, %v1557
    %v1560 = vsel %vm110, %v1558, %v1556
    %v1561 = vsel %vm111, %v1559, %v1557
    %v1562 = vxor.u32 %v1560, 2147483648
    %v1563 = vxor.u32 %v1561, 2147483648
    %v1564 = vmul.f32 %v1562, 1.442695
    %v1565 = vpow.pop %v1564
    %v1566 = vmul.f32 %v1563, 1.442695
    %v1567 = vpow.pop %v1566
    %v1568 = vadd.f32 %v1565, 1.0
    %v1569 = vadd.f32 %v1567, 1.0
    %v1570 = vrcp.pop %v1568
    %v1571 = vmul.f32 1.0, %v1570
    %v1572 = vrcp.pop %v1569
    %v1573 = vmul.f32 1.0, %v1572
    %v1574 = vadd.f32 %v1571, %v1571
    %v1575 = vadd.f32 %v1573, %v1573
    %v1576 = vsub.f32 %v1574, 1.0
    %v1577 = vsub.f32 %v1575, 1.0
    %v1578 = vsel %vm110, %v1576, %v1571
    %v1579 = vsel %vm111, %v1577, %v1573
    %v1580 = vmul.f32 %v1578, %v1343
    %v1581 = vmul.f32 %v1578, %v1579
    %1583 = vrot.lane.b32.xlu0 %v1581, 64
    %v1584 = vpop.permute.xlu0 %1583
    %v1586 = vadd.f32 %v1580, %v1584
    %v1587 = vtanh.pop %v1586
    %v1588 = vmul.f32 %v1579, %v1587
    %v1589 = vpack.c.bf16 %v1588, %v1588
    %1591 = vrot.lane.b32.xlu0 %v1589, 64
    %v1592 = vpop.permute.xlu0 %1591
    %v1594 = vsel %vm273, %v1592, 0
    %1596 = vmatprep.subr.bf16.mxu0 0
    %1597 = vmatpush1.bf16.msra.mxu0 0
    %1598 = vmatprep.subr.bf16.mxu0 0
    %1599 = vmatpush1.bf16.msra.mxu0 0
    %1600 = vmatprep.subr.bf16.mxu0 0
    %1601 = vmatpush1.bf16.msra.mxu0 0
    %1602 = vmatprep.subr.bf16.mxu0 0
    %1603 = vmatpush1.bf16.msra.mxu0 0
    %1604 = vmatprep.subr.bf16.mxu0 0
    %1605 = vmatpush1.bf16.msra.mxu0 %v373
    %1606 = vmatprep.subr.bf16.mxu0 0
    %1607 = vmatpush1.bf16.msra.mxu0 %v372
    %1608 = vmatprep.subr.bf16.mxu0 0
    %1609 = vmatpush1.bf16.msra.mxu0 %v371
    %1610 = vmatprep.subr.bf16.mxu0 0
    %1611 = vmatpush1.bf16.msra.mxu0 %v370
    %1612 = vmatprep.subr.bf16.mxu0 0
    %1613 = vmatpush2.bf16.msra.mxu0 0
    %1614 = vmatprep.subr.bf16.mxu0 0
    %1615 = vmatpush2.bf16.msra.mxu0 0
    %1616 = vmatprep.subr.bf16.mxu0 0
    %1617 = vmatpush2.bf16.msra.mxu0 0
    %1618 = vmatprep.subr.bf16.mxu0 0
    %1619 = vmatpush2.bf16.msra.mxu0 0
    %1620 = vmatprep.subr.bf16.mxu0 0
    %1621 = vmatpush2.bf16.msra.mxu0 0
    %1622 = vmatprep.subr.bf16.mxu0 0
    %1623 = vmatpush2.bf16.msra.mxu0 0
    %1624 = vmatprep.subr.bf16.mxu0 0
    %1625 = vmatpush2.bf16.msra.mxu0 0
    %1626 = vmatprep.subr.bf16.mxu0 0
    %1627 = vmatpush2.bf16.msra.mxu0 0
    %1628 = vmatprep.mubr.bf16.mxu0 0
    %1629 = vmatmul.mubr.bf16.gmra.mxu0 %v1594
    %v1630 = vpop.f32.mrf.mxu0
    %v1631 = vadd.f32 %v1510, %v1630
    %v1632 = vpop.f32.mrf.mxu0
    %v1633 = vpop.f32.mrf.mxu0
    %v1634 = vpop.f32.mrf.mxu0
    %1635 = vdwg.mxu0
    %v1636 = vadd.f32 %v1631, %v101
    %v1637 = vadd.f32 %v1636, %v1636
    %v1638 = vsel %vm114, %v1637, %v1636
    %v1639 = vxor.u32 %v1638, 2147483648
    %v1640 = vmul.f32 %v1639, 1.442695
    %v1641 = vpow.pop %v1640
    %v1642 = vadd.f32 %v1641, 1.0
    %v1643 = vrcp.pop %v1642
    %v1644 = vmul.f32 1.0, %v1643
    %v1645 = vadd.f32 %v1644, %v1644
    %v1646 = vsub.f32 %v1645, 1.0
    %v1647 = vsel %vm114, %v1646, %v1644
    %v1648 = vmul.f32 %v1647, %v1415
    %1650 = vrot.lane.b32.xlu0 %v1647, 64
    %v1651 = vpop.permute.xlu0 %1650
    %v1653 = vmul.f32 %v1647, %v1651
    %1655 = vrot.lane.b32.xlu0 %v1653, 32
    %v1656 = vpop.permute.xlu0 %1655
    %v1658 = vadd.f32 %v1648, %v1656
    %v1659 = vtanh.pop %v1658
    %1661 = vrot.lane.b32.xlu0 %v1659, 64
    %v1662 = vpop.permute.xlu0 %1661
    %v1664 = vmul.f32 %v1647, %v1662
    %v1665 = vpack.c.bf16 %v1664, %v1664
    %s1666 = scalar_lea.vmem %s0, 6
    %v1667 = vld [vmem:[%s1666] sm:$0x1]
    %v1669 = vsel %vm125, %v1667, 0
    %1671 = vmatprep.subr.bf16.mxu0 0
    %1672 = vmatpush1.bf16.msra.mxu0 0
    %1673 = vmatprep.subr.bf16.mxu0 0
    %1674 = vmatpush1.bf16.msra.mxu0 0
    %1675 = vmatprep.subr.bf16.mxu0 0
    %1676 = vmatpush1.bf16.msra.mxu0 0
    %1677 = vmatprep.subr.bf16.mxu0 0
    %1678 = vmatpush1.bf16.msra.mxu0 0
    %1679 = vmatprep.subr.bf16.mxu0 0
    %1680 = vmatpush1.bf16.msra.mxu0 0
    %1681 = vmatprep.subr.bf16.mxu0 0
    %1682 = vmatpush1.bf16.msra.mxu0 0
    %1683 = vmatprep.subr.bf16.mxu0 0
    %1684 = vmatpush1.bf16.msra.mxu0 0
    %1685 = vmatprep.subr.bf16.mxu0 %v134
    %1686 = vmatpush1.bf16.msra.mxu0 %v131
    %1687 = vmatprep.subr.bf16.mxu0 0
    %1688 = vmatpush2.bf16.msra.mxu0 0
    %1689 = vmatprep.subr.bf16.mxu0 0
    %1690 = vmatpush2.bf16.msra.mxu0 0
    %1691 = vmatprep.subr.bf16.mxu0 0
    %1692 = vmatpush2.bf16.msra.mxu0 0
    %1693 = vmatprep.subr.bf16.mxu0 0
    %1694 = vmatpush2.bf16.msra.mxu0 0
    %1695 = vmatprep.subr.bf16.mxu0 0
    %1696 = vmatpush2.bf16.msra.mxu0 0
    %1697 = vmatprep.subr.bf16.mxu0 0
    %1698 = vmatpush2.bf16.msra.mxu0 0
    %1699 = vmatprep.subr.bf16.mxu0 0
    %1700 = vmatpush2.bf16.msra.mxu0 0
    %1701 = vmatprep.subr.bf16.mxu0 0
    %1702 = vmatpush2.bf16.msra.mxu0 0
    %1703 = vmatprep.mubr.bf16.mxu0 0
    %1704 = vmatmul.mubr.bf16.gmra.mxu0 %v1669
    %v1705 = vpop.f32.mrf.mxu0
    %v1706 = vadd.f32 %v89, %v1705
    %v1707 = vpop.f32.mrf.mxu0
    %v1708 = vadd.f32 %v93, %v1707
    %v1709 = vpop.f32.mrf.mxu0
    %v1710 = vpop.f32.mrf.mxu0
    %1711 = vdwg.mxu0
    %1713 = vrot.lane.b32.xlu0 %v1665, 32
    %v1714 = vpop.permute.xlu0 %1713
    %v1716 = vsel %vm189, %v1714, 0
    %1718 = vmatprep.subr.bf16.mxu0 0
    %1719 = vmatpush1.bf16.msra.mxu0 0
    %1720 = vmatprep.subr.bf16.mxu0 0
    %1721 = vmatpush1.bf16.msra.mxu0 0
    %1722 = vmatprep.subr.bf16.mxu0 0
    %1723 = vmatpush1.bf16.msra.mxu0 0
    %1724 = vmatprep.subr.bf16.mxu0 0
    %1725 = vmatpush1.bf16.msra.mxu0 0
    %1726 = vmatprep.subr.bf16.mxu0 0
    %1727 = vmatpush1.bf16.msra.mxu0 0
    %1728 = vmatprep.subr.bf16.mxu0 0
    %1729 = vmatpush1.bf16.msra.mxu0 0
    %1730 = vmatprep.subr.bf16.mxu0 0
    %1731 = vmatpush1.bf16.msra.mxu0 %v186
    %1732 = vmatprep.subr.bf16.mxu0 0
    %1733 = vmatpush1.bf16.msra.mxu0 %v185
    %1734 = vmatprep.subr.bf16.mxu0 0
    %1735 = vmatpush2.bf16.msra.mxu0 0
    %1736 = vmatprep.subr.bf16.mxu0 0
    %1737 = vmatpush2.bf16.msra.mxu0 0
    %1738 = vmatprep.subr.bf16.mxu0 0
    %1739 = vmatpush2.bf16.msra.mxu0 0
    %1740 = vmatprep.subr.bf16.mxu0 0
    %1741 = vmatpush2.bf16.msra.mxu0 0
    %1742 = vmatprep.subr.bf16.mxu0 0
    %1743 = vmatpush2.bf16.msra.mxu0 0
    %1744 = vmatprep.subr.bf16.mxu0 0
    %1745 = vmatpush2.bf16.msra.mxu0 0
    %1746 = vmatprep.subr.bf16.mxu0 0
    %1747 = vmatpush2.bf16.msra.mxu0 0
    %1748 = vmatprep.subr.bf16.mxu0 0
    %1749 = vmatpush2.bf16.msra.mxu0 0
    %1750 = vmatprep.mubr.bf16.mxu0 0
    %1751 = vmatmul.mubr.bf16.gmra.mxu0 %v1716
    %v1752 = vpop.f32.mrf.mxu0
    %v1753 = vadd.f32 0.0, %v1752
    %v1754 = vpop.f32.mrf.mxu0
    %v1755 = vpop.f32.mrf.mxu0
    %v1756 = vpop.f32.mrf.mxu0
    %1757 = vdwg.mxu0
    %1758 = vmatprep.subr.bf16.mxu0 0
    %1759 = vmatpush1.bf16.msra.mxu0 0
    %1760 = vmatprep.subr.bf16.mxu0 0
    %1761 = vmatpush1.bf16.msra.mxu0 0
    %1762 = vmatprep.subr.bf16.mxu0 0
    %1763 = vmatpush1.bf16.msra.mxu0 0
    %1764 = vmatprep.subr.bf16.mxu0 0
    %1765 = vmatpush1.bf16.msra.mxu0 0
    %1766 = vmatprep.subr.bf16.mxu0 %v264
    %1767 = vmatpush1.bf16.msra.mxu0 %v263
    %1768 = vmatprep.subr.bf16.mxu0 %v262
    %1769 = vmatpush1.bf16.msra.mxu0 %v261
    %1770 = vmatprep.subr.bf16.mxu0 %v260
    %1771 = vmatpush1.bf16.msra.mxu0 %v259
    %1772 = vmatprep.subr.bf16.mxu0 %v258
    %1773 = vmatpush1.bf16.msra.mxu0 %v257
    %1774 = vmatprep.subr.bf16.mxu0 0
    %1775 = vmatpush2.bf16.msra.mxu0 0
    %1776 = vmatprep.subr.bf16.mxu0 0
    %1777 = vmatpush2.bf16.msra.mxu0 0
    %1778 = vmatprep.subr.bf16.mxu0 0
    %1779 = vmatpush2.bf16.msra.mxu0 0
    %1780 = vmatprep.subr.bf16.mxu0 0
    %1781 = vmatpush2.bf16.msra.mxu0 0
    %1782 = vmatprep.subr.bf16.mxu0 0
    %1783 = vmatpush2.bf16.msra.mxu0 0
    %1784 = vmatprep.subr.bf16.mxu0 0
    %1785 = vmatpush2.bf16.msra.mxu0 0
    %1786 = vmatprep.subr.bf16.mxu0 0
    %1787 = vmatpush2.bf16.msra.mxu0 0
    %1788 = vmatprep.subr.bf16.mxu0 0
    %1789 = vmatpush2.bf16.msra.mxu0 0
    %1790 = vmatprep.mubr.bf16.mxu0 0
    %1791 = vmatmul.mubr.bf16.gmra.mxu0 %v1594
    %v1792 = vpop.f32.mrf.mxu0
    %v1793 = vadd.f32 0.0, %v1792
    %v1794 = vpop.f32.mrf.mxu0
    %v1795 = vadd.f32 0.0, %v1794
    %v1796 = vpop.f32.mrf.mxu0
    %v1797 = vpop.f32.mrf.mxu0
    %1798 = vdwg.mxu0
    %v1799 = vadd.f32 %v1706, %v1793
    %v1800 = vadd.f32 %v1708, %v1795
    %v1801 = vadd.f32 %v1799, %v1799
    %v1802 = vadd.f32 %v1800, %v1800
    %v1803 = vsel %vm110, %v1801, %v1799
    %v1804 = vsel %vm111, %v1802, %v1800
    %v1805 = vxor.u32 %v1803, 2147483648
    %v1806 = vxor.u32 %v1804, 2147483648
    %v1807 = vmul.f32 %v1805, 1.442695
    %v1808 = vpow.pop %v1807
    %v1809 = vmul.f32 %v1806, 1.442695
    %v1810 = vpow.pop %v1809
    %v1811 = vadd.f32 %v1808, 1.0
    %v1812 = vadd.f32 %v1810, 1.0
    %v1813 = vrcp.pop %v1811
    %v1814 = vmul.f32 1.0, %v1813
    %v1815 = vrcp.pop %v1812
    %v1816 = vmul.f32 1.0, %v1815
    %v1817 = vadd.f32 %v1814, %v1814
    %v1818 = vadd.f32 %v1816, %v1816
    %v1819 = vsub.f32 %v1817, 1.0
    %v1820 = vsub.f32 %v1818, 1.0
    %v1821 = vsel %vm110, %v1819, %v1814
    %v1822 = vsel %vm111, %v1820, %v1816
    %v1823 = vmul.f32 %v1821, %v1586
    %v1824 = vmul.f32 %v1821, %v1822
    %1826 = vrot.lane.b32.xlu0 %v1824, 64
    %v1827 = vpop.permute.xlu0 %1826
    %v1829 = vadd.f32 %v1823, %v1827
    %v1830 = vtanh.pop %v1829
    %v1831 = vmul.f32 %v1822, %v1830
    %v1832 = vpack.c.bf16 %v1831, %v1831
    %1834 = vrot.lane.b32.xlu0 %v1832, 64
    %v1835 = vpop.permute.xlu0 %1834
    %v1837 = vsel %vm273, %v1835, 0
    %1839 = vmatprep.subr.bf16.mxu0 0
    %1840 = vmatpush1.bf16.msra.mxu0 0
    %1841 = vmatprep.subr.bf16.mxu0 0
    %1842 = vmatpush1.bf16.msra.mxu0 0
    %1843 = vmatprep.subr.bf16.mxu0 0
    %1844 = vmatpush1.bf16.msra.mxu0 0
    %1845 = vmatprep.subr.bf16.mxu0 0
    %1846 = vmatpush1.bf16.msra.mxu0 0
    %1847 = vmatprep.subr.bf16.mxu0 0
    %1848 = vmatpush1.bf16.msra.mxu0 %v373
    %1849 = vmatprep.subr.bf16.mxu0 0
    %1850 = vmatpush1.bf16.msra.mxu0 %v372
    %1851 = vmatprep.subr.bf16.mxu0 0
    %1852 = vmatpush1.bf16.msra.mxu0 %v371
    %1853 = vmatprep.subr.bf16.mxu0 0
    %1854 = vmatpush1.bf16.msra.mxu0 %v370
    %1855 = vmatprep.subr.bf16.mxu0 0
    %1856 = vmatpush2.bf16.msra.mxu0 0
    %1857 = vmatprep.subr.bf16.mxu0 0
    %1858 = vmatpush2.bf16.msra.mxu0 0
    %1859 = vmatprep.subr.bf16.mxu0 0
    %1860 = vmatpush2.bf16.msra.mxu0 0
    %1861 = vmatprep.subr.bf16.mxu0 0
    %1862 = vmatpush2.bf16.msra.mxu0 0
    %1863 = vmatprep.subr.bf16.mxu0 0
    %1864 = vmatpush2.bf16.msra.mxu0 0
    %1865 = vmatprep.subr.bf16.mxu0 0
    %1866 = vmatpush2.bf16.msra.mxu0 0
    %1867 = vmatprep.subr.bf16.mxu0 0
    %1868 = vmatpush2.bf16.msra.mxu0 0
    %1869 = vmatprep.subr.bf16.mxu0 0
    %1870 = vmatpush2.bf16.msra.mxu0 0
    %1871 = vmatprep.mubr.bf16.mxu0 0
    %1872 = vmatmul.mubr.bf16.gmra.mxu0 %v1837
    %v1873 = vpop.f32.mrf.mxu0
    %v1874 = vadd.f32 %v1753, %v1873
    %v1875 = vpop.f32.mrf.mxu0
    %v1876 = vpop.f32.mrf.mxu0
    %v1877 = vpop.f32.mrf.mxu0
    %1878 = vdwg.mxu0
    %v1879 = vadd.f32 %v1874, %v101
    %v1880 = vadd.f32 %v1879, %v1879
    %v1881 = vsel %vm114, %v1880, %v1879
    %v1882 = vxor.u32 %v1881, 2147483648
    %v1883 = vmul.f32 %v1882, 1.442695
    %v1884 = vpow.pop %v1883
    %v1885 = vadd.f32 %v1884, 1.0
    %v1886 = vrcp.pop %v1885
    %v1887 = vmul.f32 1.0, %v1886
    %v1888 = vadd.f32 %v1887, %v1887
    %v1889 = vsub.f32 %v1888, 1.0
    %v1890 = vsel %vm114, %v1889, %v1887
    %v1891 = vmul.f32 %v1890, %v1658
    %1893 = vrot.lane.b32.xlu0 %v1890, 64
    %v1894 = vpop.permute.xlu0 %1893
    %v1896 = vmul.f32 %v1890, %v1894
    %1898 = vrot.lane.b32.xlu0 %v1896, 32
    %v1899 = vpop.permute.xlu0 %1898
    %v1901 = vadd.f32 %v1891, %v1899
    %v1902 = vtanh.pop %v1901
    %1904 = vrot.lane.b32.xlu0 %v1902, 64
    %v1905 = vpop.permute.xlu0 %1904
    %v1907 = vmul.f32 %v1890, %v1905
    %v1908 = vpack.c.bf16 %v1907, %v1907
    %s1909 = scalar_lea.vmem %s0, 7
    %v1910 = vld [vmem:[%s1909] sm:$0x1]
    %v1912 = vsel %vm125, %v1910, 0
    %1914 = vmatprep.subr.bf16.mxu0 0
    %1915 = vmatpush1.bf16.msra.mxu0 0
    %1916 = vmatprep.subr.bf16.mxu0 0
    %1917 = vmatpush1.bf16.msra.mxu0 0
    %1918 = vmatprep.subr.bf16.mxu0 0
    %1919 = vmatpush1.bf16.msra.mxu0 0
    %1920 = vmatprep.subr.bf16.mxu0 0
    %1921 = vmatpush1.bf16.msra.mxu0 0
    %1922 = vmatprep.subr.bf16.mxu0 0
    %1923 = vmatpush1.bf16.msra.mxu0 0
    %1924 = vmatprep.subr.bf16.mxu0 0
    %1925 = vmatpush1.bf16.msra.mxu0 0
    %1926 = vmatprep.subr.bf16.mxu0 0
    %1927 = vmatpush1.bf16.msra.mxu0 0
    %1928 = vmatprep.subr.bf16.mxu0 %v134
    %1929 = vmatpush1.bf16.msra.mxu0 %v131
    %1930 = vmatprep.subr.bf16.mxu0 0
    %1931 = vmatpush2.bf16.msra.mxu0 0
    %1932 = vmatprep.subr.bf16.mxu0 0
    %1933 = vmatpush2.bf16.msra.mxu0 0
    %1934 = vmatprep.subr.bf16.mxu0 0
    %1935 = vmatpush2.bf16.msra.mxu0 0
    %1936 = vmatprep.subr.bf16.mxu0 0
    %1937 = vmatpush2.bf16.msra.mxu0 0
    %1938 = vmatprep.subr.bf16.mxu0 0
    %1939 = vmatpush2.bf16.msra.mxu0 0
    %1940 = vmatprep.subr.bf16.mxu0 0
    %1941 = vmatpush2.bf16.msra.mxu0 0
    %1942 = vmatprep.subr.bf16.mxu0 0
    %1943 = vmatpush2.bf16.msra.mxu0 0
    %1944 = vmatprep.subr.bf16.mxu0 0
    %1945 = vmatpush2.bf16.msra.mxu0 0
    %1946 = vmatprep.mubr.bf16.mxu0 0
    %1947 = vmatmul.mubr.bf16.gmra.mxu0 %v1912
    %v1948 = vpop.f32.mrf.mxu0
    %v1949 = vadd.f32 %v89, %v1948
    %v1950 = vpop.f32.mrf.mxu0
    %v1951 = vadd.f32 %v93, %v1950
    %v1952 = vpop.f32.mrf.mxu0
    %v1953 = vpop.f32.mrf.mxu0
    %1954 = vdwg.mxu0
    %1956 = vrot.lane.b32.xlu0 %v1908, 32
    %v1957 = vpop.permute.xlu0 %1956
    %v1959 = vsel %vm189, %v1957, 0
    %1961 = vmatprep.subr.bf16.mxu0 0
    %1962 = vmatpush1.bf16.msra.mxu0 0
    %1963 = vmatprep.subr.bf16.mxu0 0
    %1964 = vmatpush1.bf16.msra.mxu0 0
    %1965 = vmatprep.subr.bf16.mxu0 0
    %1966 = vmatpush1.bf16.msra.mxu0 0
    %1967 = vmatprep.subr.bf16.mxu0 0
    %1968 = vmatpush1.bf16.msra.mxu0 0
    %1969 = vmatprep.subr.bf16.mxu0 0
    %1970 = vmatpush1.bf16.msra.mxu0 0
    %1971 = vmatprep.subr.bf16.mxu0 0
    %1972 = vmatpush1.bf16.msra.mxu0 0
    %1973 = vmatprep.subr.bf16.mxu0 0
    %1974 = vmatpush1.bf16.msra.mxu0 %v186
    %1975 = vmatprep.subr.bf16.mxu0 0
    %1976 = vmatpush1.bf16.msra.mxu0 %v185
    %1977 = vmatprep.subr.bf16.mxu0 0
    %1978 = vmatpush2.bf16.msra.mxu0 0
    %1979 = vmatprep.subr.bf16.mxu0 0
    %1980 = vmatpush2.bf16.msra.mxu0 0
    %1981 = vmatprep.subr.bf16.mxu0 0
    %1982 = vmatpush2.bf16.msra.mxu0 0
    %1983 = vmatprep.subr.bf16.mxu0 0
    %1984 = vmatpush2.bf16.msra.mxu0 0
    %1985 = vmatprep.subr.bf16.mxu0 0
    %1986 = vmatpush2.bf16.msra.mxu0 0
    %1987 = vmatprep.subr.bf16.mxu0 0
    %1988 = vmatpush2.bf16.msra.mxu0 0
    %1989 = vmatprep.subr.bf16.mxu0 0
    %1990 = vmatpush2.bf16.msra.mxu0 0
    %1991 = vmatprep.subr.bf16.mxu0 0
    %1992 = vmatpush2.bf16.msra.mxu0 0
    %1993 = vmatprep.mubr.bf16.mxu0 0
    %1994 = vmatmul.mubr.bf16.gmra.mxu0 %v1959
    %v1995 = vpop.f32.mrf.mxu0
    %v1996 = vadd.f32 0.0, %v1995
    %v1997 = vpop.f32.mrf.mxu0
    %v1998 = vpop.f32.mrf.mxu0
    %v1999 = vpop.f32.mrf.mxu0
    %2000 = vdwg.mxu0
    %2001 = vmatprep.subr.bf16.mxu0 0
    %2002 = vmatpush1.bf16.msra.mxu0 0
    %2003 = vmatprep.subr.bf16.mxu0 0
    %2004 = vmatpush1.bf16.msra.mxu0 0
    %2005 = vmatprep.subr.bf16.mxu0 0
    %2006 = vmatpush1.bf16.msra.mxu0 0
    %2007 = vmatprep.subr.bf16.mxu0 0
    %2008 = vmatpush1.bf16.msra.mxu0 0
    %2009 = vmatprep.subr.bf16.mxu0 %v264
    %2010 = vmatpush1.bf16.msra.mxu0 %v263
    %2011 = vmatprep.subr.bf16.mxu0 %v262
    %2012 = vmatpush1.bf16.msra.mxu0 %v261
    %2013 = vmatprep.subr.bf16.mxu0 %v260
    %2014 = vmatpush1.bf16.msra.mxu0 %v259
    %2015 = vmatprep.subr.bf16.mxu0 %v258
    %2016 = vmatpush1.bf16.msra.mxu0 %v257
    %2017 = vmatprep.subr.bf16.mxu0 0
    %2018 = vmatpush2.bf16.msra.mxu0 0
    %2019 = vmatprep.subr.bf16.mxu0 0
    %2020 = vmatpush2.bf16.msra.mxu0 0
    %2021 = vmatprep.subr.bf16.mxu0 0
    %2022 = vmatpush2.bf16.msra.mxu0 0
    %2023 = vmatprep.subr.bf16.mxu0 0
    %2024 = vmatpush2.bf16.msra.mxu0 0
    %2025 = vmatprep.subr.bf16.mxu0 0
    %2026 = vmatpush2.bf16.msra.mxu0 0
    %2027 = vmatprep.subr.bf16.mxu0 0
    %2028 = vmatpush2.bf16.msra.mxu0 0
    %2029 = vmatprep.subr.bf16.mxu0 0
    %2030 = vmatpush2.bf16.msra.mxu0 0
    %2031 = vmatprep.subr.bf16.mxu0 0
    %2032 = vmatpush2.bf16.msra.mxu0 0
    %2033 = vmatprep.mubr.bf16.mxu0 0
    %2034 = vmatmul.mubr.bf16.gmra.mxu0 %v1837
    %v2035 = vpop.f32.mrf.mxu0
    %v2036 = vadd.f32 0.0, %v2035
    %v2037 = vpop.f32.mrf.mxu0
    %v2038 = vadd.f32 0.0, %v2037
    %v2039 = vpop.f32.mrf.mxu0
    %v2040 = vpop.f32.mrf.mxu0
    %2041 = vdwg.mxu0
    %v2042 = vadd.f32 %v1949, %v2036
    %v2043 = vadd.f32 %v1951, %v2038
    %v2044 = vadd.f32 %v2042, %v2042
    %v2045 = vadd.f32 %v2043, %v2043
    %v2046 = vsel %vm110, %v2044, %v2042
    %v2047 = vsel %vm111, %v2045, %v2043
    %v2048 = vxor.u32 %v2046, 2147483648
    %v2049 = vxor.u32 %v2047, 2147483648
    %v2050 = vmul.f32 %v2048, 1.442695
    %v2051 = vpow.pop %v2050
    %v2052 = vmul.f32 %v2049, 1.442695
    %v2053 = vpow.pop %v2052
    %v2054 = vadd.f32 %v2051, 1.0
    %v2055 = vadd.f32 %v2053, 1.0
    %v2056 = vrcp.pop %v2054
    %v2057 = vmul.f32 1.0, %v2056
    %v2058 = vrcp.pop %v2055
    %v2059 = vmul.f32 1.0, %v2058
    %v2060 = vadd.f32 %v2057, %v2057
    %v2061 = vadd.f32 %v2059, %v2059
    %v2062 = vsub.f32 %v2060, 1.0
    %v2063 = vsub.f32 %v2061, 1.0
    %v2064 = vsel %vm110, %v2062, %v2057
    %v2065 = vsel %vm111, %v2063, %v2059
    %v2066 = vmul.f32 %v2064, %v1829
    %v2067 = vmul.f32 %v2064, %v2065
    %2069 = vrot.lane.b32.xlu0 %v2067, 64
    %v2070 = vpop.permute.xlu0 %2069
    %v2072 = vadd.f32 %v2066, %v2070
    %v2073 = vtanh.pop %v2072
    %v2074 = vmul.f32 %v2065, %v2073
    %v2075 = vpack.c.bf16 %v2074, %v2074
    %2077 = vrot.lane.b32.xlu0 %v2075, 64
    %v2078 = vpop.permute.xlu0 %2077
    %v2080 = vsel %vm273, %v2078, 0
    %2082 = vmatprep.subr.bf16.mxu0 0
    %2083 = vmatpush1.bf16.msra.mxu0 0
    %2084 = vmatprep.subr.bf16.mxu0 0
    %2085 = vmatpush1.bf16.msra.mxu0 0
    %2086 = vmatprep.subr.bf16.mxu0 0
    %2087 = vmatpush1.bf16.msra.mxu0 0
    %2088 = vmatprep.subr.bf16.mxu0 0
    %2089 = vmatpush1.bf16.msra.mxu0 0
    %2090 = vmatprep.subr.bf16.mxu0 0
    %2091 = vmatpush1.bf16.msra.mxu0 %v373
    %2092 = vmatprep.subr.bf16.mxu0 0
    %2093 = vmatpush1.bf16.msra.mxu0 %v372
    %2094 = vmatprep.subr.bf16.mxu0 0
    %2095 = vmatpush1.bf16.msra.mxu0 %v371
    %2096 = vmatprep.subr.bf16.mxu0 0
    %2097 = vmatpush1.bf16.msra.mxu0 %v370
    %2098 = vmatprep.subr.bf16.mxu0 0
    %2099 = vmatpush2.bf16.msra.mxu0 0
    %2100 = vmatprep.subr.bf16.mxu0 0
    %2101 = vmatpush2.bf16.msra.mxu0 0
    %2102 = vmatprep.subr.bf16.mxu0 0
    %2103 = vmatpush2.bf16.msra.mxu0 0
    %2104 = vmatprep.subr.bf16.mxu0 0
    %2105 = vmatpush2.bf16.msra.mxu0 0
    %2106 = vmatprep.subr.bf16.mxu0 0
    %2107 = vmatpush2.bf16.msra.mxu0 0
    %2108 = vmatprep.subr.bf16.mxu0 0
    %2109 = vmatpush2.bf16.msra.mxu0 0
    %2110 = vmatprep.subr.bf16.mxu0 0
    %2111 = vmatpush2.bf16.msra.mxu0 0
    %2112 = vmatprep.subr.bf16.mxu0 0
    %2113 = vmatpush2.bf16.msra.mxu0 0
    %2114 = vmatprep.mubr.bf16.mxu0 0
    %2115 = vmatmul.mubr.bf16.gmra.mxu0 %v2080
    %v2116 = vpop.f32.mrf.mxu0
    %v2117 = vadd.f32 %v1996, %v2116
    %v2118 = vpop.f32.mrf.mxu0
    %v2119 = vpop.f32.mrf.mxu0
    %v2120 = vpop.f32.mrf.mxu0
    %2121 = vdwg.mxu0
    %v2122 = vadd.f32 %v2117, %v101
    %v2123 = vadd.f32 %v2122, %v2122
    %v2124 = vsel %vm114, %v2123, %v2122
    %v2125 = vxor.u32 %v2124, 2147483648
    %v2126 = vmul.f32 %v2125, 1.442695
    %v2127 = vpow.pop %v2126
    %v2128 = vadd.f32 %v2127, 1.0
    %v2129 = vrcp.pop %v2128
    %v2130 = vmul.f32 1.0, %v2129
    %v2131 = vadd.f32 %v2130, %v2130
    %v2132 = vsub.f32 %v2131, 1.0
    %v2133 = vsel %vm114, %v2132, %v2130
    %v2134 = vmul.f32 %v2133, %v1901
    %2136 = vrot.lane.b32.xlu0 %v2133, 64
    %v2137 = vpop.permute.xlu0 %2136
    %v2139 = vmul.f32 %v2133, %v2137
    %2141 = vrot.lane.b32.xlu0 %v2139, 32
    %v2142 = vpop.permute.xlu0 %2141
    %v2144 = vadd.f32 %v2134, %v2142
    %v2145 = vtanh.pop %v2144
    %2147 = vrot.lane.b32.xlu0 %v2145, 64
    %v2148 = vpop.permute.xlu0 %2147
    %v2150 = vmul.f32 %v2133, %v2148
    %v2151 = vld [vmem:[%s7] sm:$0x1]
    %v2153 = vlaneseq
    %v2154 = vshrl.u32 %v2153, 7
    %v2155 = vsub.s32 0, %v2154
    %v2156 = vrot.slane %v2151, %v2155
    %2157 = vrot.lane.b32.xlu0 %v2156, 96
    %v2158 = vpop.permute.xlu0 %2157
    %v2160 = vmul.f32 %v2150, %v2158
    %2162 = vrot.lane.b32.xlu0 %v2160, 32
    %v2163 = vpop.permute.xlu0 %2162
    %vm2165 = vcmask 254976
    %v2166 = vsel %vm2165, %v2163, 0.0
    %2167 = vadd.xlane.f32.xlu0 %v2166
    %v2168 = vpop.xlane.xlu0 %2167
    %v2169 = vld [vmem:[#allocation2] sm:$0x1]
    %v2171 = vlaneseq
    %v2172 = vshrl.u32 %v2171, 7
    %v2173 = vsub.s32 0, %v2172
    %v2174 = vrot.slane %v2169, %v2173
    %v2176 = vadd.f32 %v2168, %v2174
    %vm2177 = vcmask 1024
    %2178 = vst.msk [vmem:[%s9] sm:$0x3] %vm2177, %v2176
    // Predicated region
    $region46: #{tpu_custom_call.1} parent=1 // pred_check
      _
    $region47: #{tpu_custom_call.1} parent=1 // pred_check_branch
      %2180 = sbr.rel (0) target = $region49
    $region48: #{tpu_custom_call.1} parent=1 // pred_region
      _
    $region49: #{tpu_custom_call.1} parent=1 // pred_fallthru
      _
    // Predicated region
    $region50: #{tpu_custom_call.1} parent=1 // pred_check
      _
    $region51: #{tpu_custom_call.1} parent=1 // pred_check_branch
      %2182 = sbr.rel (0) target = $region53
    $region52: #{tpu_custom_call.1} parent=1 // pred_region
      _
    $region53: #{tpu_custom_call.1} parent=1 // pred_fallthru
      _
    %2183 = vsyncpa [#allocation4], 1
    %2184 = vsyncpa [#allocation6], 1

</llo_original>
